<compile_context>
chip_gen: v7x
topology: tpu7x:2x2x1
jax: 0.10.0
libtpu: 0.0.40
codegen_flags: <defaults>
</compile_context>

<pallas_src>
import functools

import numpy as np

import jax
import jax.numpy as jnp
from jax.experimental import pallas as pl
from jax.experimental.pallas import tpu as pltpu


# ----------------------------- fused Pallas kernel --------------------------


def _tgcn_cell_kernel(
    hx_ref,     # (B*N, H+1)  row-stacked [hidden | x]
    lapb_ref,   # (B*N, B*N)  block-diagonal laplacian kron(I_B, L)
    w1f_ref,    # (H+1, 2H)   [W1[1:, :]; W1[0, :]]  (h-rows first, x-row last)
    w2f_ref,    # (H+1, H)    [W2[1:, :]; W2[0, :]]
    bias_ref,   # (2, 2H)     row0 = b1, row1 = [b2 | 0]
    sel_ref,    # (4*B*N + K*RO, B*N)  [TE; TO; UE; UO; S4_0..S4_{K-1}]
    ext_ref,    # (4H+1, H+1) [XLO; XHI; xm]  lane-extraction + keep-x row
    emb_ref,    # (K*H, 128)  identity -> lane-block embedding matrices
    out_ref,    # (RO, 128)   new hidden, lane-dense flat layout
):
    f32 = jnp.float32
    dot = functools.partial(jnp.dot, preferred_element_type=f32)

    hx = hx_ref[...]                         # (BN, H+1)
    BN, F = hx.shape
    H = F - 1
    lanes = out_ref.shape[-1]                # 128
    K = lanes // H                           # nodes packed per output row
    RO = out_ref.shape[0]                    # B * N // K

    lapb = lapb_ref[...]                     # (BN, BN)
    w1f = w1f_ref[...]                       # (H+1, 2H)
    w2f = w2f_ref[...]                       # (H+1, H)
    bias = bias_ref[...]                     # (2, 2H)
    b1 = bias[0:1, :]                        # (1, 2H)
    b2 = bias[1:2, 0:H]                      # (1, H)
    sel = sel_ref[...]
    ext = ext_ref[...]
    xlo = ext[0:2 * H, :]                    # (2H, H+1)  extract conc[:, :H]
    xhi = ext[2 * H:4 * H, :]                # (2H, H+1)  extract conc[:, H:]
    xm = ext[4 * H:4 * H + 1, :]             # (1, H+1)   1.0 at lane H (x column)

    # --- graph_conv1: one laplacian push (x folded into the last column) and
    #     one fused (H+1, 2H) weight matmul + a single 2H-wide sigmoid.
    axh = dot(lapb, hx)                                     # (BN, H+1) = [L@h | L@x]
    conc = jax.nn.sigmoid(dot(axh, w1f) + b1)               # (BN, 2H)

    # --- torch.chunk(r, u) node re-interleave: all four row selections in one
    #     MXU push, then lane extraction via constant 0/1 matmuls.
    selc = dot(sel[0:4 * BN, :], conc)                      # (4BN, 2H)
    r33 = dot(selc[0:BN], xlo) + dot(selc[BN:2 * BN], xhi)              # (BN, H+1), lane H = 0
    u33 = dot(selc[2 * BN:3 * BN], xlo) + dot(selc[3 * BN:4 * BN], xhi)  # (BN, H+1)
    u = u33[:, 0:H]                                         # (BN, H)
    h = hx[:, 0:H]                                          # (BN, H)

    # --- graph_conv2 on [r*h | x]: xm keeps the x column, laplacian push reused.
    xrh = (r33 + xm) * hx                                   # (BN, H+1): [r*h | x]
    axrh = dot(lapb, xrh)                                   # (BN, H+1)
    c = jnp.tanh(dot(axrh, w2f) + b2)                       # (BN, H)

    # --- GRU gate (node layout).
    newh = u * h + (1.0 - u) * c                            # (BN, H)

    # --- repack into the 128-lane-dense flat hidden layout:
    #     out[b*(N//K)+q, k*H:(k+1)*H] = newh[b*N + q*K + k, :]
    dense = None
    for k in range(K):
        rows = sel[4 * BN + k * RO: 4 * BN + (k + 1) * RO, :]       # (RO, BN)
        term = dot(dot(rows, newh), emb_ref[k * H:(k + 1) * H, :])  # (RO, 128)
        dense = term if dense is None else dense + term
    out_ref[...] = dense.astype(out_ref.dtype)


# -------------------- hoisted 0/1 selection / embedding constants -----------


def _tgcn_constants(B, N, H, lanes):
    """Compile-time constant matrices (numpy; traced into the program once)."""
    BN = B * N
    half = N // 2
    K = lanes // H               # nodes packed per lane-dense output row
    rpb = N // K                 # dense rows per batch item
    RO = B * rpb

    TE = np.zeros((BN, BN), np.float32)
    TO = np.zeros((BN, BN), np.float32)
    UE = np.zeros((BN, BN), np.float32)
    UO = np.zeros((BN, BN), np.float32)
    for b in range(B):
        for i in range(half):
            # r_node[2i]   = conc[i, :H],   r_node[2i+1] = conc[i, H:]
            TE[b * N + 2 * i, b * N + i] = 1.0
            TO[b * N + 2 * i + 1, b * N + i] = 1.0
            # u_node[2i]   = conc[N/2+i, :H], u_node[2i+1] = conc[N/2+i, H:]
            UE[b * N + 2 * i, b * N + half + i] = 1.0
            UO[b * N + 2 * i + 1, b * N + half + i] = 1.0

    S4 = np.zeros((K, RO, BN), np.float32)
    for k in range(K):
        for b in range(B):
            for q in range(rpb):
                S4[k, b * rpb + q, b * N + q * K + k] = 1.0
    sel = np.concatenate([TE, TO, UE, UO] + [S4[k] for k in range(K)], axis=0)

    xlo = np.zeros((2 * H, H + 1), np.float32)
    xlo[np.arange(H), np.arange(H)] = 1.0
    xhi = np.zeros((2 * H, H + 1), np.float32)
    xhi[H + np.arange(H), np.arange(H)] = 1.0
    xm = np.zeros((1, H + 1), np.float32)
    xm[0, H] = 1.0
    ext = np.concatenate([xlo, xhi, xm], axis=0)            # (4H+1, H+1)

    emb = np.eye(K * H, lanes, dtype=np.float32)            # (K*H, 128) == I_128
    return sel, ext, emb


# ------------------------------ TGCN cell wrapper ----------------------------


def calculate_laplacian_with_self_loop(adj):
    m = adj + jnp.eye(adj.shape[0], dtype=adj.dtype)
    row_sum = m.sum(axis=1)
    d_inv_sqrt = jnp.where(row_sum > 0, row_sum ** -0.5, 0.0)
    d_mat = jnp.diag(d_inv_sqrt)
    return (m @ d_mat).T @ d_mat


def tgcn_cell(inputs, hidden_state, lap, w1, b1, w2, b2, hidden_dim):
    """Fused Pallas implementation of TGCNCell.forward.

    inputs: (B, N), hidden_state: (B, N*H). Returns (new_hidden, new_hidden)."""
    B, N = inputs.shape
    H = hidden_dim
    assert hidden_state.shape == (B, N * H)
    assert w1.shape == (H + 1, 2 * H) and w2.shape == (H + 1, H)
    assert N % 2 == 0, "torch.chunk split over nodes requires an even N"
    lanes = 128
    assert lanes % H == 0 and (N * H) % lanes == 0, "lane-dense output packing"
    K = lanes // H
    RO = B * N // K

    f32 = jnp.float32
    # Layout plumbing only (all tiny).  Hidden is DMA'd exactly once (inside hx).
    hx = jnp.concatenate(
        [hidden_state.reshape(B * N, H), inputs.reshape(B * N, 1)], axis=1
    ).astype(f32)                                           # (B*N, H+1)
    lapb = jnp.kron(jnp.eye(B, dtype=f32), lap.astype(f32))  # (B*N, B*N) block-diag
    w1f = jnp.concatenate([w1[1:, :], w1[0:1, :]], axis=0).astype(f32)  # (H+1, 2H)
    w2f = jnp.concatenate([w2[1:, :], w2[0:1, :]], axis=0).astype(f32)  # (H+1, H)
    bias = jnp.zeros((2, 2 * H), f32).at[0, :].set(b1.astype(f32)).at[1, :H].set(
        b2.astype(f32))

    sel, ext, emb = _tgcn_constants(B, N, H, lanes)         # compile-time constants

    full2d = lambda shape: pl.BlockSpec(shape, lambda i: (0, 0))

    out = pl.pallas_call(
        _tgcn_cell_kernel,
        out_shape=jax.ShapeDtypeStruct((RO, lanes), f32),
        grid=(1,),                                           # single fused step
        in_specs=[
            full2d(hx.shape),
            full2d(lapb.shape),
            full2d(w1f.shape),
            full2d(w2f.shape),
            full2d(bias.shape),
            full2d(sel.shape),
            full2d(ext.shape),
            full2d(emb.shape),
        ],
        out_specs=full2d((RO, lanes)),
    )(hx, lapb, w1f, w2f, bias, sel, ext, emb)

    new_h = out.reshape(B, N * H)
    return new_h, new_h


# --------------------------- pure-JAX reference -----------------------------


def _ref_graph_conv(inputs, hidden_state, lap, w, b, num_gru_units, output_dim):
    B, N = inputs.shape
    x = inputs.reshape(B, N, 1)
    h = hidden_state.reshape(B, N, num_gru_units)
    cat = jnp.concatenate([x, h], axis=2)                   # (B, N, F)
    cat = jnp.transpose(cat, (1, 2, 0)).reshape(N, (num_gru_units + 1) * B)
    ax = lap @ cat
    ax = ax.reshape(N, num_gru_units + 1, B)
    ax = jnp.transpose(ax, (2, 0, 1)).reshape(B * N, num_gru_units + 1)
    out = ax @ w + b
    return out.reshape(B, N * output_dim)


def _ref_cell(inputs, hidden, lap, w1, b1, w2, b2, H):
    N = inputs.shape[1]
    conc = jax.nn.sigmoid(_ref_graph_conv(inputs, hidden, lap, w1, b1, H, 2 * H))
    r, u = conc[:, : N * H], conc[:, N * H:]
    c = jnp.tanh(_ref_graph_conv(inputs, r * hidden, lap, w2, b2, H, H))
    return u * hidden + (1.0 - u) * c


# --------------------------------- main -------------------------------------


def _xavier_uniform(key, shape):
    fan_in, fan_out = shape
    bound = (6.0 / (fan_in + fan_out)) ** 0.5
    return jax.random.uniform(key, shape, jnp.float32, -bound, bound)


if __name__ == "__main__":
    B, N, H = 2, 16, 32          # batch, num_nodes, hidden_dim (= num_gru_units)
    F = H + 1

    key = jax.random.PRNGKey(0)
    k_adj, k_x, k_h, k_w1, k_w2 = jax.random.split(key, 5)

    # Deterministic synthetic adjacency (symmetric 0/1 matrix).
    adj = (jax.random.uniform(k_adj, (N, N)) < 0.3).astype(jnp.float32)
    adj = jnp.maximum(adj, adj.T)
    lap = calculate_laplacian_with_self_loop(adj)

    # Parameters (shapes from TGCNGraphConvolution.__init__):
    #   graph_conv1: weights (H+1, 2H), biases init 1.0
    #   graph_conv2: weights (H+1, H),  biases init 0.0
    w1 = _xavier_uniform(k_w1, (F, 2 * H))
    b1 = jnp.full((2 * H,), 1.0, dtype=jnp.float32)
    w2 = _xavier_uniform(k_w2, (F, H))
    b2 = jnp.zeros((H,), dtype=jnp.float32)

    inputs = jax.random.normal(k_x, (B, N), dtype=jnp.float32)
    hidden = jax.random.normal(k_h, (B, N * H), dtype=jnp.float32)

    cell = jax.jit(functools.partial(tgcn_cell, hidden_dim=H))
    new_h, out = cell(inputs, hidden, lap, w1, b1, w2, b2)
    new_h = jax.block_until_ready(new_h)

    ref = _ref_cell(inputs, hidden, lap, w1, b1, w2, b2, H)
    assert new_h.shape == (B, N * H) and out.shape == (B, N * H)
    assert jnp.allclose(new_h, ref, rtol=1e-4, atol=1e-4), "mismatch vs. reference"

    print("KERNEL_OK")
</pallas_src>

<mosaic_0001>
module attributes {stable_mosaic.version = 11 : i64} {
  func.func @_tgcn_cell_kernel(%arg0: i32, %arg1: memref<32x33xf32, #tpu.memory_space<vmem>>, %arg2: memref<32x32xf32, #tpu.memory_space<vmem>>, %arg3: memref<33x64xf32, #tpu.memory_space<vmem>>, %arg4: memref<33x32xf32, #tpu.memory_space<vmem>>, %arg5: memref<2x64xf32, #tpu.memory_space<vmem>>, %arg6: memref<160x32xf32, #tpu.memory_space<vmem>>, %arg7: memref<129x33xf32, #tpu.memory_space<vmem>>, %arg8: memref<128x128xf32, #tpu.memory_space<vmem>>, %arg9: memref<8x128xf32, #tpu.memory_space<vmem>>) attributes {dimension_semantics = [#tpu.dimension_semantics<arbitrary>], iteration_bounds = array<i64: 1>, scalar_prefetch = 0 : i64, scratch_operands = 0 : i64, tpu.core_type = #tpu.core_type<tc>, window_params = [{pipeline_mode = #tpu.pipeline_mode<synchronous>, transform_indices = @transform_0, window_bounds = array<i64: 32, 33>}, {pipeline_mode = #tpu.pipeline_mode<synchronous>, transform_indices = @transform_1, window_bounds = array<i64: 32, 32>}, {pipeline_mode = #tpu.pipeline_mode<synchronous>, transform_indices = @transform_2, window_bounds = array<i64: 33, 64>}, {pipeline_mode = #tpu.pipeline_mode<synchronous>, transform_indices = @transform_3, window_bounds = array<i64: 33, 32>}, {pipeline_mode = #tpu.pipeline_mode<synchronous>, transform_indices = @transform_4, window_bounds = array<i64: 2, 64>}, {pipeline_mode = #tpu.pipeline_mode<synchronous>, transform_indices = @transform_5, window_bounds = array<i64: 160, 32>}, {pipeline_mode = #tpu.pipeline_mode<synchronous>, transform_indices = @transform_6, window_bounds = array<i64: 129, 33>}, {pipeline_mode = #tpu.pipeline_mode<synchronous>, transform_indices = @transform_7, window_bounds = array<i64: 128, 128>}, {pipeline_mode = #tpu.pipeline_mode<synchronous>, transform_indices = @transform_8, window_bounds = array<i64: 8, 128>}]} {
    %c0 = arith.constant 0 : index
    %c0_0 = arith.constant 0 : index
    %0 = vector.load %arg1[%c0, %c0_0] : memref<32x33xf32, #tpu.memory_space<vmem>>, vector<32x33xf32>
    %c0_1 = arith.constant 0 : index
    %c0_2 = arith.constant 0 : index
    %1 = vector.load %arg2[%c0_1, %c0_2] : memref<32x32xf32, #tpu.memory_space<vmem>>, vector<32x32xf32>
    %c0_3 = arith.constant 0 : index
    %c0_4 = arith.constant 0 : index
    %2 = vector.load %arg3[%c0_3, %c0_4] : memref<33x64xf32, #tpu.memory_space<vmem>>, vector<33x64xf32>
    %c0_5 = arith.constant 0 : index
    %c0_6 = arith.constant 0 : index
    %3 = vector.load %arg4[%c0_5, %c0_6] : memref<33x32xf32, #tpu.memory_space<vmem>>, vector<33x32xf32>
    %c0_7 = arith.constant 0 : index
    %c0_8 = arith.constant 0 : index
    %4 = vector.load %arg5[%c0_7, %c0_8] : memref<2x64xf32, #tpu.memory_space<vmem>>, vector<2x64xf32>
    %5 = vector.extract_strided_slice %4 {offsets = [0, 0], sizes = [1, 64], strides = [1, 1]} : vector<2x64xf32> to vector<1x64xf32>
    %6 = vector.extract_strided_slice %4 {offsets = [1, 0], sizes = [1, 32], strides = [1, 1]} : vector<2x64xf32> to vector<1x32xf32>
    %c0_9 = arith.constant 0 : index
    %c0_10 = arith.constant 0 : index
    %7 = vector.load %arg6[%c0_9, %c0_10] : memref<160x32xf32, #tpu.memory_space<vmem>>, vector<160x32xf32>
    %c0_11 = arith.constant 0 : index
    %c0_12 = arith.constant 0 : index
    %8 = vector.load %arg7[%c0_11, %c0_12] : memref<129x33xf32, #tpu.memory_space<vmem>>, vector<129x33xf32>
    %9 = vector.extract_strided_slice %8 {offsets = [0, 0], sizes = [64, 33], strides = [1, 1]} : vector<129x33xf32> to vector<64x33xf32>
    %10 = vector.extract_strided_slice %8 {offsets = [64, 0], sizes = [64, 33], strides = [1, 1]} : vector<129x33xf32> to vector<64x33xf32>
    %11 = vector.extract_strided_slice %8 {offsets = [128, 0], sizes = [1, 33], strides = [1, 1]} : vector<129x33xf32> to vector<1x33xf32>
    %cst = arith.constant dense<0.000000e+00> : vector<32x33xf32>
    %12 = tpu.matmul %1, %0, %cst {dimension_numbers = #tpu.dot_dimension_numbers<[1], [0], [0], [1], [0, 0, 1, 1], [], []>} : vector<32x32xf32>, vector<32x33xf32>, vector<32x33xf32> -> vector<32x33xf32>
    %cst_13 = arith.constant dense<0.000000e+00> : vector<32x64xf32>
    %13 = tpu.matmul %12, %2, %cst_13 {dimension_numbers = #tpu.dot_dimension_numbers<[1], [0], [0], [1], [0, 0, 1, 1], [], []>} : vector<32x33xf32>, vector<33x64xf32>, vector<32x64xf32> -> vector<32x64xf32>
    %14 = vector.broadcast %5 : vector<1x64xf32> to vector<32x64xf32>
    %15 = arith.addf %13, %14 : vector<32x64xf32>
    %16 = arith.negf %15 : vector<32x64xf32>
    %17 = math.exp %16 : vector<32x64xf32>
    %cst_14 = arith.constant 1.000000e+00 : f32
    %18 = vector.broadcast %cst_14 : f32 to vector<32x64xf32>
    %19 = arith.addf %18, %17 : vector<32x64xf32>
    %20 = arith.divf %18, %19 : vector<32x64xf32>
    %21 = vector.extract_strided_slice %7 {offsets = [0, 0], sizes = [128, 32], strides = [1, 1]} : vector<160x32xf32> to vector<128x32xf32>
    %cst_15 = arith.constant dense<0.000000e+00> : vector<128x64xf32>
    %22 = tpu.matmul %21, %20, %cst_15 {dimension_numbers = #tpu.dot_dimension_numbers<[1], [0], [0], [1], [0, 0, 1, 1], [], []>} : vector<128x32xf32>, vector<32x64xf32>, vector<128x64xf32> -> vector<128x64xf32>
    %23 = vector.extract_strided_slice %22 {offsets = [0, 0], sizes = [32, 64], strides = [1, 1]} : vector<128x64xf32> to vector<32x64xf32>
    %cst_16 = arith.constant dense<0.000000e+00> : vector<32x33xf32>
    %24 = tpu.matmul %23, %9, %cst_16 {dimension_numbers = #tpu.dot_dimension_numbers<[1], [0], [0], [1], [0, 0, 1, 1], [], []>} : vector<32x64xf32>, vector<64x33xf32>, vector<32x33xf32> -> vector<32x33xf32>
    %25 = vector.extract_strided_slice %22 {offsets = [32, 0], sizes = [32, 64], strides = [1, 1]} : vector<128x64xf32> to vector<32x64xf32>
    %cst_17 = arith.constant dense<0.000000e+00> : vector<32x33xf32>
    %26 = tpu.matmul %25, %10, %cst_17 {dimension_numbers = #tpu.dot_dimension_numbers<[1], [0], [0], [1], [0, 0, 1, 1], [], []>} : vector<32x64xf32>, vector<64x33xf32>, vector<32x33xf32> -> vector<32x33xf32>
    %27 = arith.addf %24, %26 : vector<32x33xf32>
    %28 = vector.extract_strided_slice %22 {offsets = [64, 0], sizes = [32, 64], strides = [1, 1]} : vector<128x64xf32> to vector<32x64xf32>
    %cst_18 = arith.constant dense<0.000000e+00> : vector<32x33xf32>
    %29 = tpu.matmul %28, %9, %cst_18 {dimension_numbers = #tpu.dot_dimension_numbers<[1], [0], [0], [1], [0, 0, 1, 1], [], []>} : vector<32x64xf32>, vector<64x33xf32>, vector<32x33xf32> -> vector<32x33xf32>
    %30 = vector.extract_strided_slice %22 {offsets = [96, 0], sizes = [32, 64], strides = [1, 1]} : vector<128x64xf32> to vector<32x64xf32>
    %cst_19 = arith.constant dense<0.000000e+00> : vector<32x33xf32>
    %31 = tpu.matmul %30, %10, %cst_19 {dimension_numbers = #tpu.dot_dimension_numbers<[1], [0], [0], [1], [0, 0, 1, 1], [], []>} : vector<32x64xf32>, vector<64x33xf32>, vector<32x33xf32> -> vector<32x33xf32>
    %32 = arith.addf %29, %31 : vector<32x33xf32>
    %33 = vector.extract_strided_slice %32 {offsets = [0, 0], sizes = [32, 32], strides = [1, 1]} : vector<32x33xf32> to vector<32x32xf32>
    %34 = vector.extract_strided_slice %0 {offsets = [0, 0], sizes = [32, 32], strides = [1, 1]} : vector<32x33xf32> to vector<32x32xf32>
    %35 = vector.broadcast %11 : vector<1x33xf32> to vector<32x33xf32>
    %36 = arith.addf %27, %35 : vector<32x33xf32>
    %37 = arith.mulf %36, %0 : vector<32x33xf32>
    %cst_20 = arith.constant dense<0.000000e+00> : vector<32x33xf32>
    %38 = tpu.matmul %1, %37, %cst_20 {dimension_numbers = #tpu.dot_dimension_numbers<[1], [0], [0], [1], [0, 0, 1, 1], [], []>} : vector<32x32xf32>, vector<32x33xf32>, vector<32x33xf32> -> vector<32x33xf32>
    %cst_21 = arith.constant dense<0.000000e+00> : vector<32x32xf32>
    %39 = tpu.matmul %38, %3, %cst_21 {dimension_numbers = #tpu.dot_dimension_numbers<[1], [0], [0], [1], [0, 0, 1, 1], [], []>} : vector<32x33xf32>, vector<33x32xf32>, vector<32x32xf32> -> vector<32x32xf32>
    %40 = vector.broadcast %6 : vector<1x32xf32> to vector<32x32xf32>
    %41 = arith.addf %39, %40 : vector<32x32xf32>
    %42 = math.tanh %41 : vector<32x32xf32>
    %43 = arith.mulf %33, %34 : vector<32x32xf32>
    %cst_22 = arith.constant 1.000000e+00 : f32
    %44 = vector.broadcast %cst_22 : f32 to vector<32x32xf32>
    %45 = arith.subf %44, %33 : vector<32x32xf32>
    %46 = arith.mulf %45, %42 : vector<32x32xf32>
    %47 = arith.addf %43, %46 : vector<32x32xf32>
    %48 = vector.extract_strided_slice %7 {offsets = [128, 0], sizes = [8, 32], strides = [1, 1]} : vector<160x32xf32> to vector<8x32xf32>
    %cst_23 = arith.constant dense<0.000000e+00> : vector<8x32xf32>
    %49 = tpu.matmul %48, %47, %cst_23 {dimension_numbers = #tpu.dot_dimension_numbers<[1], [0], [0], [1], [0, 0, 1, 1], [], []>} : vector<8x32xf32>, vector<32x32xf32>, vector<8x32xf32> -> vector<8x32xf32>
    %c0_24 = arith.constant 0 : index
    %c0_25 = arith.constant 0 : index
    %50 = vector.load %arg8[%c0_24, %c0_25] : memref<128x128xf32, #tpu.memory_space<vmem>>, vector<32x128xf32>
    %cst_26 = arith.constant dense<0.000000e+00> : vector<8x128xf32>
    %51 = tpu.matmul %49, %50, %cst_26 {dimension_numbers = #tpu.dot_dimension_numbers<[1], [0], [0], [1], [0, 0, 1, 1], [], []>} : vector<8x32xf32>, vector<32x128xf32>, vector<8x128xf32> -> vector<8x128xf32>
    %52 = vector.extract_strided_slice %7 {offsets = [136, 0], sizes = [8, 32], strides = [1, 1]} : vector<160x32xf32> to vector<8x32xf32>
    %cst_27 = arith.constant dense<0.000000e+00> : vector<8x32xf32>
    %53 = tpu.matmul %52, %47, %cst_27 {dimension_numbers = #tpu.dot_dimension_numbers<[1], [0], [0], [1], [0, 0, 1, 1], [], []>} : vector<8x32xf32>, vector<32x32xf32>, vector<8x32xf32> -> vector<8x32xf32>
    %c32 = arith.constant 32 : index
    %c0_28 = arith.constant 0 : index
    %54 = vector.load %arg8[%c32, %c0_28] : memref<128x128xf32, #tpu.memory_space<vmem>>, vector<32x128xf32>
    %cst_29 = arith.constant dense<0.000000e+00> : vector<8x128xf32>
    %55 = tpu.matmul %53, %54, %cst_29 {dimension_numbers = #tpu.dot_dimension_numbers<[1], [0], [0], [1], [0, 0, 1, 1], [], []>} : vector<8x32xf32>, vector<32x128xf32>, vector<8x128xf32> -> vector<8x128xf32>
    %56 = arith.addf %51, %55 : vector<8x128xf32>
    %57 = vector.extract_strided_slice %7 {offsets = [144, 0], sizes = [8, 32], strides = [1, 1]} : vector<160x32xf32> to vector<8x32xf32>
    %cst_30 = arith.constant dense<0.000000e+00> : vector<8x32xf32>
    %58 = tpu.matmul %57, %47, %cst_30 {dimension_numbers = #tpu.dot_dimension_numbers<[1], [0], [0], [1], [0, 0, 1, 1], [], []>} : vector<8x32xf32>, vector<32x32xf32>, vector<8x32xf32> -> vector<8x32xf32>
    %c64 = arith.constant 64 : index
    %c0_31 = arith.constant 0 : index
    %59 = vector.load %arg8[%c64, %c0_31] : memref<128x128xf32, #tpu.memory_space<vmem>>, vector<32x128xf32>
    %cst_32 = arith.constant dense<0.000000e+00> : vector<8x128xf32>
    %60 = tpu.matmul %58, %59, %cst_32 {dimension_numbers = #tpu.dot_dimension_numbers<[1], [0], [0], [1], [0, 0, 1, 1], [], []>} : vector<8x32xf32>, vector<32x128xf32>, vector<8x128xf32> -> vector<8x128xf32>
    %61 = arith.addf %56, %60 : vector<8x128xf32>
    %62 = vector.extract_strided_slice %7 {offsets = [152, 0], sizes = [8, 32], strides = [1, 1]} : vector<160x32xf32> to vector<8x32xf32>
    %cst_33 = arith.constant dense<0.000000e+00> : vector<8x32xf32>
    %63 = tpu.matmul %62, %47, %cst_33 {dimension_numbers = #tpu.dot_dimension_numbers<[1], [0], [0], [1], [0, 0, 1, 1], [], []>} : vector<8x32xf32>, vector<32x32xf32>, vector<8x32xf32> -> vector<8x32xf32>
    %c96 = arith.constant 96 : index
    %c0_34 = arith.constant 0 : index
    %64 = vector.load %arg8[%c96, %c0_34] : memref<128x128xf32, #tpu.memory_space<vmem>>, vector<32x128xf32>
    %cst_35 = arith.constant dense<0.000000e+00> : vector<8x128xf32>
    %65 = tpu.matmul %63, %64, %cst_35 {dimension_numbers = #tpu.dot_dimension_numbers<[1], [0], [0], [1], [0, 0, 1, 1], [], []>} : vector<8x32xf32>, vector<32x128xf32>, vector<8x128xf32> -> vector<8x128xf32>
    %66 = arith.addf %61, %65 : vector<8x128xf32>
    %c0_36 = arith.constant 0 : index
    %c0_37 = arith.constant 0 : index
    %67 = vector.load %arg9[%c0_36, %c0_37] : memref<8x128xf32, #tpu.memory_space<vmem>>, vector<8x128xf32>
    tpu.vector_store %arg9[%c0_36, %c0_37], %66 {strides = array<i32>} : memref<8x128xf32, #tpu.memory_space<vmem>>, vector<8x128xf32>,
    return
  }
  func.func @transform_0(%arg0: i32) -> (i32, i32) {
    %c0_i32 = arith.constant 0 : i32
    %c0_i32_0 = arith.constant 0 : i32
    %c0_i32_1 = arith.constant 0 : i32
    return %c0_i32, %c0_i32_0 : i32, i32
  }
  func.func @transform_1(%arg0: i32) -> (i32, i32) {
    %c0_i32 = arith.constant 0 : i32
    %c0_i32_0 = arith.constant 0 : i32
    %c0_i32_1 = arith.constant 0 : i32
    return %c0_i32, %c0_i32_0 : i32, i32
  }
  func.func @transform_2(%arg0: i32) -> (i32, i32) {
    %c0_i32 = arith.constant 0 : i32
    %c0_i32_0 = arith.constant 0 : i32
    %c0_i32_1 = arith.constant 0 : i32
    return %c0_i32, %c0_i32_0 : i32, i32
  }
  func.func @transform_3(%arg0: i32) -> (i32, i32) {
    %c0_i32 = arith.constant 0 : i32
    %c0_i32_0 = arith.constant 0 : i32
    %c0_i32_1 = arith.constant 0 : i32
    return %c0_i32, %c0_i32_0 : i32, i32
  }
  func.func @transform_4(%arg0: i32) -> (i32, i32) {
    %c0_i32 = arith.constant 0 : i32
    %c0_i32_0 = arith.constant 0 : i32
    %c0_i32_1 = arith.constant 0 : i32
    return %c0_i32, %c0_i32_0 : i32, i32
  }
  func.func @transform_5(%arg0: i32) -> (i32, i32) {
    %c0_i32 = arith.constant 0 : i32
    %c0_i32_0 = arith.constant 0 : i32
    %c0_i32_1 = arith.constant 0 : i32
    return %c0_i32, %c0_i32_0 : i32, i32
  }
  func.func @transform_6(%arg0: i32) -> (i32, i32) {
    %c0_i32 = arith.constant 0 : i32
    %c0_i32_0 = arith.constant 0 : i32
    %c0_i32_1 = arith.constant 0 : i32
    return %c0_i32, %c0_i32_0 : i32, i32
  }
  func.func @transform_7(%arg0: i32) -> (i32, i32) {
    %c0_i32 = arith.constant 0 : i32
    %c0_i32_0 = arith.constant 0 : i32
    %c0_i32_1 = arith.constant 0 : i32
    return %c0_i32, %c0_i32_0 : i32, i32
  }
  func.func @transform_8(%arg0: i32) -> (i32, i32) {
    %c0_i32 = arith.constant 0 : i32
    %c0_i32_0 = arith.constant 0 : i32
    %c0_i32_1 = arith.constant 0 : i32
    return %c0_i32, %c0_i32_0 : i32, i32
  }
}

</mosaic_0001>

<llo_original>
// kernel: tgcn_cell.1
$region0: #{tgcn_cell.1}
  #allocation0 [shape = 'u32[]', space=smem, size = 0x4, offset = 0x4, fixed_abs, tag = 'smem constant byte address 0x4 - core index']
  #allocation1 [shape = 'u32[144,128]{1,0:T(1,128)}', space=vmem, size = 0x12000, scoped, tag = 'internal scratch']
  %s0 = inlined_call_operand.vmem [shape: f32[32,33], index: 0, kind: input, shape index: {}]
  %s1 = inlined_call_operand.vmem [shape: f32[32,32], index: 1, kind: input, shape index: {}]
  %s2 = inlined_call_operand.vmem [shape: f32[33,64], index: 2, kind: input, shape index: {}]
  %s3 = inlined_call_operand.vmem [shape: f32[33,32], index: 3, kind: input, shape index: {}]
  %s4 = inlined_call_operand.vmem [shape: f32[2,64], index: 4, kind: input, shape index: {}]
  %s5 = inlined_call_operand.vmem [shape: f32[160,32], index: 5, kind: input, shape index: {}]
  %s6 = inlined_call_operand.vmem [shape: f32[129,33], index: 6, kind: input, shape index: {}]
  %s7 = inlined_call_operand.vmem [shape: f32[128,128], index: 7, kind: input, shape index: {}]
  %s8 = inlined_call_operand.vmem [shape: f32[8,128], index: 8, kind: output, shape index: {}]
  %s9 = sld [smem:[#allocation0]]
  $region42: #{tgcn_cell.1} parent=0
    _
  %s11 = ssub.s32 1, %s9
  %s12 = scalar_select 0, %s11, %s9
  // Predicated region
  $region2: #{tgcn_cell.1} parent=0 // pred_check
    _
  $region3: #{tgcn_cell.1} parent=0 // pred_check_branch
    %14 = sbr.rel (0) target = $region5
  $region4: #{tgcn_cell.1} parent=0 // pred_region
    _
  $region5: #{tgcn_cell.1} parent=0 // pred_fallthru
    _
  // Predicated region
  $region6: #{tgcn_cell.1} parent=0 // pred_check
    _
  $region7: #{tgcn_cell.1} parent=0 // pred_check_branch
    %16 = sbr.rel (0) target = $region9
  $region8: #{tgcn_cell.1} parent=0 // pred_region
    _
  $region9: #{tgcn_cell.1} parent=0 // pred_fallthru
    _
  // Predicated region
  $region10: #{tgcn_cell.1} parent=0 // pred_check
    _
  $region11: #{tgcn_cell.1} parent=0 // pred_check_branch
    %18 = sbr.rel (0) target = $region13
  $region12: #{tgcn_cell.1} parent=0 // pred_region
    _
  $region13: #{tgcn_cell.1} parent=0 // pred_fallthru
    _
  // Predicated region
  $region14: #{tgcn_cell.1} parent=0 // pred_check
    _
  $region15: #{tgcn_cell.1} parent=0 // pred_check_branch
    %20 = sbr.rel (0) target = $region17
  $region16: #{tgcn_cell.1} parent=0 // pred_region
    _
  $region17: #{tgcn_cell.1} parent=0 // pred_fallthru
    _
  // Predicated region
  $region18: #{tgcn_cell.1} parent=0 // pred_check
    _
  $region19: #{tgcn_cell.1} parent=0 // pred_check_branch
    %22 = sbr.rel (0) target = $region21
  $region20: #{tgcn_cell.1} parent=0 // pred_region
    _
  $region21: #{tgcn_cell.1} parent=0 // pred_fallthru
    _
  // Predicated region
  $region22: #{tgcn_cell.1} parent=0 // pred_check
    _
  $region23: #{tgcn_cell.1} parent=0 // pred_check_branch
    %24 = sbr.rel (0) target = $region25
  $region24: #{tgcn_cell.1} parent=0 // pred_region
    _
  $region25: #{tgcn_cell.1} parent=0 // pred_fallthru
    _
  // Predicated region
  $region26: #{tgcn_cell.1} parent=0 // pred_check
    _
  $region27: #{tgcn_cell.1} parent=0 // pred_check_branch
    %26 = sbr.rel (0) target = $region29
  $region28: #{tgcn_cell.1} parent=0 // pred_region
    _
  $region29: #{tgcn_cell.1} parent=0 // pred_fallthru
    _
  // Predicated region
  $region30: #{tgcn_cell.1} parent=0 // pred_check
    _
  $region31: #{tgcn_cell.1} parent=0 // pred_check_branch
    %28 = sbr.rel (0) target = $region33
  $region32: #{tgcn_cell.1} parent=0 // pred_region
    _
  $region33: #{tgcn_cell.1} parent=0 // pred_fallthru
    _
  %v29 = vld [vmem:[%s0] sm:$0xff]
  %v30 = vld [vmem:[%s0 + $0x8] sm:$0xff]
  %v31 = vld [vmem:[%s0 + $0x10] sm:$0xff]
  %v32 = vld [vmem:[%s0 + $0x18] sm:$0xff]
  %v33 = vld [vmem:[%s1] sm:$0xff]
  %v34 = vld [vmem:[%s1 + $0x8] sm:$0xff]
  %v35 = vld [vmem:[%s1 + $0x10] sm:$0xff]
  %v36 = vld [vmem:[%s1 + $0x18] sm:$0xff]
  %v37 = vld [vmem:[%s2] sm:$0xff]
  %v38 = vld [vmem:[%s2 + $0x8] sm:$0xff]
  %v39 = vld [vmem:[%s2 + $0x10] sm:$0xff]
  %v40 = vld [vmem:[%s2 + $0x18] sm:$0xff]
  %v41 = vld [vmem:[%s2 + $0x20] sm:$0x1]
  %v42 = vld [vmem:[%s3] sm:$0xff]
  %v43 = vld [vmem:[%s3 + $0x8] sm:$0xff]
  %v44 = vld [vmem:[%s3 + $0x10] sm:$0xff]
  %v45 = vld [vmem:[%s3 + $0x18] sm:$0xff]
  %v46 = vld [vmem:[%s3 + $0x20] sm:$0x1]
  %v47 = vld [vmem:[%s4] sm:$0x3]
  %v48 = vld [vmem:[%s5] sm:$0xff]
  %v49 = vld [vmem:[%s5 + $0x8] sm:$0xff]
  %v50 = vld [vmem:[%s5 + $0x10] sm:$0xff]
  %v51 = vld [vmem:[%s5 + $0x18] sm:$0xff]
  %v52 = vld [vmem:[%s5 + $0x20] sm:$0xff]
  %v53 = vld [vmem:[%s5 + $0x28] sm:$0xff]
  %v54 = vld [vmem:[%s5 + $0x30] sm:$0xff]
  %v55 = vld [vmem:[%s5 + $0x38] sm:$0xff]
  %v56 = vld [vmem:[%s5 + $0x40] sm:$0xff]
  %v57 = vld [vmem:[%s5 + $0x48] sm:$0xff]
  %v58 = vld [vmem:[%s5 + $0x50] sm:$0xff]
  %v59 = vld [vmem:[%s5 + $0x58] sm:$0xff]
  %v60 = vld [vmem:[%s5 + $0x60] sm:$0xff]
  %v61 = vld [vmem:[%s5 + $0x68] sm:$0xff]
  %v62 = vld [vmem:[%s5 + $0x70] sm:$0xff]
  %v63 = vld [vmem:[%s5 + $0x78] sm:$0xff]
  %v64 = vld [vmem:[%s5 + $0x80] sm:$0xff]
  %v65 = vld [vmem:[%s5 + $0x88] sm:$0xff]
  %v66 = vld [vmem:[%s5 + $0x90] sm:$0xff]
  %v67 = vld [vmem:[%s5 + $0x98] sm:$0xff]
  %v68 = vld [vmem:[%s6] sm:$0xff]
  %v69 = vld [vmem:[%s6 + $0x8] sm:$0xff]
  %v70 = vld [vmem:[%s6 + $0x10] sm:$0xff]
  %v71 = vld [vmem:[%s6 + $0x18] sm:$0xff]
  %v72 = vld [vmem:[%s6 + $0x20] sm:$0xff]
  %v73 = vld [vmem:[%s6 + $0x28] sm:$0xff]
  %v74 = vld [vmem:[%s6 + $0x30] sm:$0xff]
  %v75 = vld [vmem:[%s6 + $0x38] sm:$0xff]
  %v76 = vld [vmem:[%s6 + $0x40] sm:$0xff]
  %v77 = vld [vmem:[%s6 + $0x48] sm:$0xff]
  %v78 = vld [vmem:[%s6 + $0x50] sm:$0xff]
  %v79 = vld [vmem:[%s6 + $0x58] sm:$0xff]
  %v80 = vld [vmem:[%s6 + $0x60] sm:$0xff]
  %v81 = vld [vmem:[%s6 + $0x68] sm:$0xff]
  %v82 = vld [vmem:[%s6 + $0x70] sm:$0xff]
  %v83 = vld [vmem:[%s6 + $0x78] sm:$0xff]
  %v84 = vld [vmem:[%s6 + $0x80] sm:$0x1]
  %vm85 = vcmask 261120
  %v87 = vsel %vm85, %v33, 0
  %v90 = vsel %vm85, %v34, 0
  %v93 = vsel %vm85, %v35, 0
  %v96 = vsel %vm85, %v36, 0
  %98 = vmatprep.subr.mxu0 0.0
  %99 = vmatpush1.msra.mxu0 %v29
  %100 = vmatprep.subr.mxu0 0.0
  %101 = vmatpush1.msra.mxu0 %v30
  %102 = vmatprep.subr.mxu0 0.0
  %103 = vmatpush1.msra.mxu0 %v31
  %104 = vmatprep.subr.mxu0 0.0
  %105 = vmatpush1.msra.mxu0 %v32
  %106 = vmatprep.subr.mxu0 0.0
  %107 = vmatpush1.msra.mxu0 0.0
  %108 = vmatprep.subr.mxu0 0.0
  %109 = vmatpush1.msra.mxu0 0.0
  %110 = vmatprep.subr.mxu0 0.0
  %111 = vmatpush1.msra.mxu0 0.0
  %112 = vmatprep.subr.mxu0 0.0
  %113 = vmatpush1.msra.mxu0 0.0
  %114 = vmatprep.subr.mxu0 0.0
  %115 = vmatpush1.msra.mxu0 0.0
  %116 = vmatprep.subr.mxu0 0.0
  %117 = vmatpush1.msra.mxu0 0.0
  %118 = vmatprep.subr.mxu0 0.0
  %119 = vmatpush1.msra.mxu0 0.0
  %120 = vmatprep.subr.mxu0 0.0
  %121 = vmatpush1.msra.mxu0 0.0
  %122 = vmatprep.subr.mxu0 0.0
  %123 = vmatpush1.msra.mxu0 0.0
  %124 = vmatprep.subr.mxu0 0.0
  %125 = vmatpush1.msra.mxu0 0.0
  %126 = vmatprep.subr.mxu0 0.0
  %127 = vmatpush1.msra.mxu0 0.0
  %128 = vmatprep.subr.mxu0 0.0
  %129 = vmatpush1.msra.mxu0 0.0
  %130 = vmatprep.subr.mxu0 0.0
  %131 = vmatpush1.msra.mxu0 0.0
  %132 = vmatprep.subr.mxu0 0.0
  %133 = vmatpush1.msra.mxu0 0.0
  %134 = vmatprep.subr.mxu0 0.0
  %135 = vmatpush1.msra.mxu0 0.0
  %136 = vmatprep.subr.mxu0 0.0
  %137 = vmatpush1.msra.mxu0 0.0
  %138 = vmatprep.subr.mxu0 0.0
  %139 = vmatpush1.msra.mxu0 0.0
  %140 = vmatprep.subr.mxu0 0.0
  %141 = vmatpush1.msra.mxu0 0.0
  %142 = vmatprep.subr.mxu0 0.0
  %143 = vmatpush1.msra.mxu0 0.0
  %144 = vmatprep.subr.mxu0 0.0
  %145 = vmatpush1.msra.mxu0 0.0
  %146 = vmatprep.subr.mxu0 0.0
  %147 = vmatpush1.msra.mxu0 0.0
  %148 = vmatprep.subr.mxu0 0.0
  %149 = vmatpush1.msra.mxu0 0.0
  %150 = vmatprep.subr.mxu0 0.0
  %151 = vmatpush1.msra.mxu0 0.0
  %152 = vmatprep.subr.mxu0 0.0
  %153 = vmatpush1.msra.mxu0 0.0
  %154 = vmatprep.subr.mxu0 0.0
  %155 = vmatpush1.msra.mxu0 0.0
  %156 = vmatprep.subr.mxu0 0.0
  %157 = vmatpush1.msra.mxu0 0.0
  %158 = vmatprep.subr.mxu0 0.0
  %159 = vmatpush1.msra.mxu0 0.0
  %160 = vmatprep.subr.mxu0 0.0
  %161 = vmatpush1.msra.mxu0 0.0
  %162 = vmatprep.mubr.f32.mxu0 0.0
  %163 = vmatmul.mubr.f32.gmra.mrb[0].mxu0 %v87
  %v164 = vpop.f32.mrb[0].mxu0
  %v165 = vadd.f32 0.0, %v164
  %v166 = vpop.f32.mrb[0].mxu0
  %167 = vmatprep.mubr.f32.mxu0 0.0
  %168 = vmatmul.mubr.f32.gmra.mrb[0].mxu0 %v90
  %v169 = vpop.f32.mrb[0].mxu0
  %v170 = vadd.f32 0.0, %v169
  %v171 = vpop.f32.mrb[0].mxu0
  %172 = vmatprep.mubr.f32.mxu0 0.0
  %173 = vmatmul.mubr.f32.gmra.mrb[0].mxu0 %v93
  %v174 = vpop.f32.mrb[0].mxu0
  %v175 = vadd.f32 0.0, %v174
  %v176 = vpop.f32.mrb[0].mxu0
  %177 = vmatprep.mubr.f32.mxu0 0.0
  %178 = vmatmul.mubr.f32.gmra.mrb[0].mxu0 %v96
  %v179 = vpop.f32.mrb[0].mxu0
  %v180 = vadd.f32 0.0, %v179
  %v181 = vpop.f32.mrb[0].mxu0
  %182 = vdwg.mxu0
  %v183 = vlaneseq
  %v184 = vshrl.u32 %v183, 7
  %v185 = vsub.s32 0, %v184
  %v186 = vrot.slane %v47, %v185
  %vm187 = vcmask 269312
  %v189 = vsel %vm187, %v165, 0
  %v192 = vsel %vm187, %v170, 0
  %v195 = vsel %vm187, %v175, 0
  %v198 = vsel %vm187, %v180, 0
  %vm200 = vcmask 1040384
  %v202 = vsel %vm200, %v41, 0
  %204 = vmatprep.subr.mxu0 0.0
  %205 = vmatpush1.msra.mxu0 %v37
  %206 = vmatprep.subr.mxu0 0.0
  %207 = vmatpush1.msra.mxu0 %v38
  %208 = vmatprep.subr.mxu0 0.0
  %209 = vmatpush1.msra.mxu0 %v39
  %210 = vmatprep.subr.mxu0 0.0
  %211 = vmatpush1.msra.mxu0 %v40
  %212 = vmatprep.subr.mxu0 0.0
  %213 = vmatpush1.msra.mxu0 %v202
  %214 = vmatprep.subr.mxu0 0.0
  %215 = vmatpush1.msra.mxu0 0.0
  %216 = vmatprep.subr.mxu0 0.0
  %217 = vmatpush1.msra.mxu0 0.0
  %218 = vmatprep.subr.mxu0 0.0
  %219 = vmatpush1.msra.mxu0 0.0
  %220 = vmatprep.subr.mxu0 0.0
  %221 = vmatpush1.msra.mxu0 0.0
  %222 = vmatprep.subr.mxu0 0.0
  %223 = vmatpush1.msra.mxu0 0.0
  %224 = vmatprep.subr.mxu0 0.0
  %225 = vmatpush1.msra.mxu0 0.0
  %226 = vmatprep.subr.mxu0 0.0
  %227 = vmatpush1.msra.mxu0 0.0
  %228 = vmatprep.subr.mxu0 0.0
  %229 = vmatpush1.msra.mxu0 0.0
  %230 = vmatprep.subr.mxu0 0.0
  %231 = vmatpush1.msra.mxu0 0.0
  %232 = vmatprep.subr.mxu0 0.0
  %233 = vmatpush1.msra.mxu0 0.0
  %234 = vmatprep.subr.mxu0 0.0
  %235 = vmatpush1.msra.mxu0 0.0
  %236 = vmatprep.subr.mxu0 0.0
  %237 = vmatpush1.msra.mxu0 0.0
  %238 = vmatprep.subr.mxu0 0.0
  %239 = vmatpush1.msra.mxu0 0.0
  %240 = vmatprep.subr.mxu0 0.0
  %241 = vmatpush1.msra.mxu0 0.0
  %242 = vmatprep.subr.mxu0 0.0
  %243 = vmatpush1.msra.mxu0 0.0
  %244 = vmatprep.subr.mxu0 0.0
  %245 = vmatpush1.msra.mxu0 0.0
  %246 = vmatprep.subr.mxu0 0.0
  %247 = vmatpush1.msra.mxu0 0.0
  %248 = vmatprep.subr.mxu0 0.0
  %249 = vmatpush1.msra.mxu0 0.0
  %250 = vmatprep.subr.mxu0 0.0
  %251 = vmatpush1.msra.mxu0 0.0
  %252 = vmatprep.subr.mxu0 0.0
  %253 = vmatpush1.msra.mxu0 0.0
  %254 = vmatprep.subr.mxu0 0.0
  %255 = vmatpush1.msra.mxu0 0.0
  %256 = vmatprep.subr.mxu0 0.0
  %257 = vmatpush1.msra.mxu0 0.0
  %258 = vmatprep.subr.mxu0 0.0
  %259 = vmatpush1.msra.mxu0 0.0
  %260 = vmatprep.subr.mxu0 0.0
  %261 = vmatpush1.msra.mxu0 0.0
  %262 = vmatprep.subr.mxu0 0.0
  %263 = vmatpush1.msra.mxu0 0.0
  %264 = vmatprep.subr.mxu0 0.0
  %265 = vmatpush1.msra.mxu0 0.0
  %266 = vmatprep.subr.mxu0 0.0
  %267 = vmatpush1.msra.mxu0 0.0
  %268 = vmatprep.mubr.f32.mxu0 0.0
  %269 = vmatmul.mubr.f32.gmra.mrb[0].mxu0 %v189
  %v270 = vpop.f32.mrb[0].mxu0
  %v271 = vadd.f32 %v186, %v270
  %v272 = vpop.f32.mrb[0].mxu0
  %273 = vmatprep.mubr.f32.mxu0 0.0
  %274 = vmatmul.mubr.f32.gmra.mrb[0].mxu0 %v192
  %v275 = vpop.f32.mrb[0].mxu0
  %v276 = vadd.f32 %v186, %v275
  %v277 = vpop.f32.mrb[0].mxu0
  %278 = vmatprep.mubr.f32.mxu0 0.0
  %279 = vmatmul.mubr.f32.gmra.mrb[0].mxu0 %v195
  %v280 = vpop.f32.mrb[0].mxu0
  %v281 = vadd.f32 %v186, %v280
  %v282 = vpop.f32.mrb[0].mxu0
  %283 = vmatprep.mubr.f32.mxu0 0.0
  %284 = vmatmul.mubr.f32.gmra.mrb[0].mxu0 %v198
  %v285 = vpop.f32.mrb[0].mxu0
  %v286 = vadd.f32 %v186, %v285
  %v287 = vpop.f32.mrb[0].mxu0
  %288 = vdwg.mxu0
  %v289 = vxor.u32 %v271, 2147483648
  %v290 = vxor.u32 %v276, 2147483648
  %v291 = vxor.u32 %v281, 2147483648
  %v292 = vxor.u32 %v286, 2147483648
  %v293 = vmul.f32 %v289, 1.442695
  %v294 = vpow.pop %v293
  %v295 = vmul.f32 %v290, 1.442695
  %v296 = vpow.pop %v295
  %v297 = vmul.f32 %v291, 1.442695
  %v298 = vpow.pop %v297
  %v299 = vmul.f32 %v292, 1.442695
  %v300 = vpow.pop %v299
  %v301 = vadd.f32 %v294, 1.0
  %v302 = vadd.f32 %v296, 1.0
  %v303 = vadd.f32 %v298, 1.0
  %v304 = vadd.f32 %v300, 1.0
  %v305 = vrcp.pop %v301
  %v306 = vmul.f32 1.0, %v305
  %v307 = vrcp.pop %v302
  %v308 = vmul.f32 1.0, %v307
  %v309 = vrcp.pop %v303
  %v310 = vmul.f32 1.0, %v309
  %v311 = vrcp.pop %v304
  %v312 = vmul.f32 1.0, %v311
  %v314 = vsel %vm85, %v48, 0
  %v317 = vsel %vm85, %v49, 0
  %v320 = vsel %vm85, %v50, 0
  %v323 = vsel %vm85, %v51, 0
  %v326 = vsel %vm85, %v52, 0
  %v329 = vsel %vm85, %v53, 0
  %v332 = vsel %vm85, %v54, 0
  %v335 = vsel %vm85, %v55, 0
  %v338 = vsel %vm85, %v56, 0
  %v341 = vsel %vm85, %v57, 0
  %v344 = vsel %vm85, %v58, 0
  %v347 = vsel %vm85, %v59, 0
  %v350 = vsel %vm85, %v60, 0
  %v353 = vsel %vm85, %v61, 0
  %v356 = vsel %vm85, %v62, 0
  %v359 = vsel %vm85, %v63, 0
  %361 = vmatprep.subr.mxu0 0.0
  %362 = vmatpush1.msra.mxu0 %v306
  %363 = vmatprep.subr.mxu0 0.0
  %364 = vmatpush1.msra.mxu0 %v308
  %365 = vmatprep.subr.mxu0 0.0
  %366 = vmatpush1.msra.mxu0 %v310
  %367 = vmatprep.subr.mxu0 0.0
  %368 = vmatpush1.msra.mxu0 %v312
  %369 = vmatprep.subr.mxu0 0.0
  %370 = vmatpush1.msra.mxu0 0.0
  %371 = vmatprep.subr.mxu0 0.0
  %372 = vmatpush1.msra.mxu0 0.0
  %373 = vmatprep.subr.mxu0 0.0
  %374 = vmatpush1.msra.mxu0 0.0
  %375 = vmatprep.subr.mxu0 0.0
  %376 = vmatpush1.msra.mxu0 0.0
  %377 = vmatprep.subr.mxu0 0.0
  %378 = vmatpush1.msra.mxu0 0.0
  %379 = vmatprep.subr.mxu0 0.0
  %380 = vmatpush1.msra.mxu0 0.0
  %381 = vmatprep.subr.mxu0 0.0
  %382 = vmatpush1.msra.mxu0 0.0
  %383 = vmatprep.subr.mxu0 0.0
  %384 = vmatpush1.msra.mxu0 0.0
  %385 = vmatprep.subr.mxu0 0.0
  %386 = vmatpush1.msra.mxu0 0.0
  %387 = vmatprep.subr.mxu0 0.0
  %388 = vmatpush1.msra.mxu0 0.0
  %389 = vmatprep.subr.mxu0 0.0
  %390 = vmatpush1.msra.mxu0 0.0
  %391 = vmatprep.subr.mxu0 0.0
  %392 = vmatpush1.msra.mxu0 0.0
  %393 = vmatprep.subr.mxu0 0.0
  %394 = vmatpush1.msra.mxu0 0.0
  %395 = vmatprep.subr.mxu0 0.0
  %396 = vmatpush1.msra.mxu0 0.0
  %397 = vmatprep.subr.mxu0 0.0
  %398 = vmatpush1.msra.mxu0 0.0
  %399 = vmatprep.subr.mxu0 0.0
  %400 = vmatpush1.msra.mxu0 0.0
  %401 = vmatprep.subr.mxu0 0.0
  %402 = vmatpush1.msra.mxu0 0.0
  %403 = vmatprep.subr.mxu0 0.0
  %404 = vmatpush1.msra.mxu0 0.0
  %405 = vmatprep.subr.mxu0 0.0
  %406 = vmatpush1.msra.mxu0 0.0
  %407 = vmatprep.subr.mxu0 0.0
  %408 = vmatpush1.msra.mxu0 0.0
  %409 = vmatprep.subr.mxu0 0.0
  %410 = vmatpush1.msra.mxu0 0.0
  %411 = vmatprep.subr.mxu0 0.0
  %412 = vmatpush1.msra.mxu0 0.0
  %413 = vmatprep.subr.mxu0 0.0
  %414 = vmatpush1.msra.mxu0 0.0
  %415 = vmatprep.subr.mxu0 0.0
  %416 = vmatpush1.msra.mxu0 0.0
  %417 = vmatprep.subr.mxu0 0.0
  %418 = vmatpush1.msra.mxu0 0.0
  %419 = vmatprep.subr.mxu0 0.0
  %420 = vmatpush1.msra.mxu0 0.0
  %421 = vmatprep.subr.mxu0 0.0
  %422 = vmatpush1.msra.mxu0 0.0
  %423 = vmatprep.subr.mxu0 0.0
  %424 = vmatpush1.msra.mxu0 0.0
  %425 = vmatprep.mubr.f32.mxu0 0.0
  %426 = vmatmul.mubr.f32.gmra.mrb[0].mxu0 %v314
  %v427 = vpop.f32.mrb[0].mxu0
  %v428 = vadd.f32 0.0, %v427
  %v429 = vpop.f32.mrb[0].mxu0
  %430 = vmatprep.mubr.f32.mxu0 0.0
  %431 = vmatmul.mubr.f32.gmra.mrb[0].mxu0 %v317
  %v432 = vpop.f32.mrb[0].mxu0
  %v433 = vadd.f32 0.0, %v432
  %v434 = vpop.f32.mrb[0].mxu0
  %435 = vmatprep.mubr.f32.mxu0 0.0
  %436 = vmatmul.mubr.f32.gmra.mrb[0].mxu0 %v320
  %v437 = vpop.f32.mrb[0].mxu0
  %v438 = vadd.f32 0.0, %v437
  %v439 = vpop.f32.mrb[0].mxu0
  %440 = vmatprep.mubr.f32.mxu0 0.0
  %441 = vmatmul.mubr.f32.gmra.mrb[0].mxu0 %v323
  %v442 = vpop.f32.mrb[0].mxu0
  %v443 = vadd.f32 0.0, %v442
  %v444 = vpop.f32.mrb[0].mxu0
  %445 = vmatprep.mubr.f32.mxu0 0.0
  %446 = vmatmul.mubr.f32.gmra.mrb[0].mxu0 %v326
  %v447 = vpop.f32.mrb[0].mxu0
  %v448 = vadd.f32 0.0, %v447
  %v449 = vpop.f32.mrb[0].mxu0
  %450 = vmatprep.mubr.f32.mxu0 0.0
  %451 = vmatmul.mubr.f32.gmra.mrb[0].mxu0 %v329
  %v452 = vpop.f32.mrb[0].mxu0
  %v453 = vadd.f32 0.0, %v452
  %v454 = vpop.f32.mrb[0].mxu0
  %455 = vmatprep.mubr.f32.mxu0 0.0
  %456 = vmatmul.mubr.f32.gmra.mrb[0].mxu0 %v332
  %v457 = vpop.f32.mrb[0].mxu0
  %v458 = vadd.f32 0.0, %v457
  %v459 = vpop.f32.mrb[0].mxu0
  %460 = vmatprep.mubr.f32.mxu0 0.0
  %461 = vmatmul.mubr.f32.gmra.mrb[0].mxu0 %v335
  %v462 = vpop.f32.mrb[0].mxu0
  %v463 = vadd.f32 0.0, %v462
  %v464 = vpop.f32.mrb[0].mxu0
  %465 = vmatprep.mubr.f32.mxu0 0.0
  %466 = vmatmul.mubr.f32.gmra.mrb[0].mxu0 %v338
  %v467 = vpop.f32.mrb[0].mxu0
  %v468 = vadd.f32 0.0, %v467
  %v469 = vpop.f32.mrb[0].mxu0
  %470 = vmatprep.mubr.f32.mxu0 0.0
  %471 = vmatmul.mubr.f32.gmra.mrb[0].mxu0 %v341
  %v472 = vpop.f32.mrb[0].mxu0
  %v473 = vadd.f32 0.0, %v472
  %v474 = vpop.f32.mrb[0].mxu0
  %475 = vmatprep.mubr.f32.mxu0 0.0
  %476 = vmatmul.mubr.f32.gmra.mrb[0].mxu0 %v344
  %v477 = vpop.f32.mrb[0].mxu0
  %v478 = vadd.f32 0.0, %v477
  %v479 = vpop.f32.mrb[0].mxu0
  %480 = vmatprep.mubr.f32.mxu0 0.0
  %481 = vmatmul.mubr.f32.gmra.mrb[0].mxu0 %v347
  %v482 = vpop.f32.mrb[0].mxu0
  %v483 = vadd.f32 0.0, %v482
  %v484 = vpop.f32.mrb[0].mxu0
  %485 = vmatprep.mubr.f32.mxu0 0.0
  %486 = vmatmul.mubr.f32.gmra.mrb[0].mxu0 %v350
  %v487 = vpop.f32.mrb[0].mxu0
  %v488 = vadd.f32 0.0, %v487
  %v489 = vpop.f32.mrb[0].mxu0
  %490 = vmatprep.mubr.f32.mxu0 0.0
  %491 = vmatmul.mubr.f32.gmra.mrb[0].mxu0 %v353
  %v492 = vpop.f32.mrb[0].mxu0
  %v493 = vadd.f32 0.0, %v492
  %v494 = vpop.f32.mrb[0].mxu0
  %495 = vmatprep.mubr.f32.mxu0 0.0
  %496 = vmatmul.mubr.f32.gmra.mrb[0].mxu0 %v356
  %v497 = vpop.f32.mrb[0].mxu0
  %v498 = vadd.f32 0.0, %v497
  %v499 = vpop.f32.mrb[0].mxu0
  %500 = vmatprep.mubr.f32.mxu0 0.0
  %501 = vmatmul.mubr.f32.gmra.mrb[0].mxu0 %v359
  %v502 = vpop.f32.mrb[0].mxu0
  %v503 = vadd.f32 0.0, %v502
  %v504 = vpop.f32.mrb[0].mxu0
  %505 = vdwg.mxu0
  %vm506 = vcmask 523264
  %v508 = vsel %vm506, %v448, 0
  %v511 = vsel %vm506, %v453, 0
  %v514 = vsel %vm506, %v458, 0
  %v517 = vsel %vm506, %v463, 0
  %519 = vmatprep.subr.mxu0 0.0
  %520 = vmatpush1.msra.mxu0 %v76
  %521 = vmatprep.subr.mxu0 0.0
  %522 = vmatpush1.msra.mxu0 %v77
  %523 = vmatprep.subr.mxu0 0.0
  %524 = vmatpush1.msra.mxu0 %v78
  %525 = vmatprep.subr.mxu0 0.0
  %526 = vmatpush1.msra.mxu0 %v79
  %527 = vmatprep.subr.mxu0 0.0
  %528 = vmatpush1.msra.mxu0 %v80
  %529 = vmatprep.subr.mxu0 0.0
  %530 = vmatpush1.msra.mxu0 %v81
  %531 = vmatprep.subr.mxu0 0.0
  %532 = vmatpush1.msra.mxu0 %v82
  %533 = vmatprep.subr.mxu0 0.0
  %534 = vmatpush1.msra.mxu0 %v83
  %535 = vmatprep.subr.mxu0 0.0
  %536 = vmatpush1.msra.mxu0 0.0
  %537 = vmatprep.subr.mxu0 0.0
  %538 = vmatpush1.msra.mxu0 0.0
  %539 = vmatprep.subr.mxu0 0.0
  %540 = vmatpush1.msra.mxu0 0.0
  %541 = vmatprep.subr.mxu0 0.0
  %542 = vmatpush1.msra.mxu0 0.0
  %543 = vmatprep.subr.mxu0 0.0
  %544 = vmatpush1.msra.mxu0 0.0
  %545 = vmatprep.subr.mxu0 0.0
  %546 = vmatpush1.msra.mxu0 0.0
  %547 = vmatprep.subr.mxu0 0.0
  %548 = vmatpush1.msra.mxu0 0.0
  %549 = vmatprep.subr.mxu0 0.0
  %550 = vmatpush1.msra.mxu0 0.0
  %551 = vmatprep.subr.mxu0 0.0
  %552 = vmatpush1.msra.mxu0 0.0
  %553 = vmatprep.subr.mxu0 0.0
  %554 = vmatpush1.msra.mxu0 0.0
  %555 = vmatprep.subr.mxu0 0.0
  %556 = vmatpush1.msra.mxu0 0.0
  %557 = vmatprep.subr.mxu0 0.0
  %558 = vmatpush1.msra.mxu0 0.0
  %559 = vmatprep.subr.mxu0 0.0
  %560 = vmatpush1.msra.mxu0 0.0
  %561 = vmatprep.subr.mxu0 0.0
  %562 = vmatpush1.msra.mxu0 0.0
  %563 = vmatprep.subr.mxu0 0.0
  %564 = vmatpush1.msra.mxu0 0.0
  %565 = vmatprep.subr.mxu0 0.0
  %566 = vmatpush1.msra.mxu0 0.0
  %567 = vmatprep.subr.mxu0 0.0
  %568 = vmatpush1.msra.mxu0 0.0
  %569 = vmatprep.subr.mxu0 0.0
  %570 = vmatpush1.msra.mxu0 0.0
  %571 = vmatprep.subr.mxu0 0.0
  %572 = vmatpush1.msra.mxu0 0.0
  %573 = vmatprep.subr.mxu0 0.0
  %574 = vmatpush1.msra.mxu0 0.0
  %575 = vmatprep.subr.mxu0 0.0
  %576 = vmatpush1.msra.mxu0 0.0
  %577 = vmatprep.subr.mxu0 0.0
  %578 = vmatpush1.msra.mxu0 0.0
  %579 = vmatprep.subr.mxu0 0.0
  %580 = vmatpush1.msra.mxu0 0.0
  %581 = vmatprep.subr.mxu0 0.0
  %582 = vmatpush1.msra.mxu0 0.0
  %583 = vmatprep.mubr.f32.mxu0 0.0
  %584 = vmatmul.mubr.f32.gmra.mrb[0].mxu0 %v508
  %v585 = vpop.f32.mrb[0].mxu0
  %v586 = vadd.f32 0.0, %v585
  %v587 = vpop.f32.mrb[0].mxu0
  %588 = vmatprep.mubr.f32.mxu0 0.0
  %589 = vmatmul.mubr.f32.gmra.mrb[0].mxu0 %v511
  %v590 = vpop.f32.mrb[0].mxu0
  %v591 = vadd.f32 0.0, %v590
  %v592 = vpop.f32.mrb[0].mxu0
  %593 = vmatprep.mubr.f32.mxu0 0.0
  %594 = vmatmul.mubr.f32.gmra.mrb[0].mxu0 %v514
  %v595 = vpop.f32.mrb[0].mxu0
  %v596 = vadd.f32 0.0, %v595
  %v597 = vpop.f32.mrb[0].mxu0
  %598 = vmatprep.mubr.f32.mxu0 0.0
  %599 = vmatmul.mubr.f32.gmra.mrb[0].mxu0 %v517
  %v600 = vpop.f32.mrb[0].mxu0
  %v601 = vadd.f32 0.0, %v600
  %v602 = vpop.f32.mrb[0].mxu0
  %603 = vdwg.mxu0
  %v605 = vsel %vm506, %v428, 0
  %v608 = vsel %vm506, %v433, 0
  %v611 = vsel %vm506, %v438, 0
  %v614 = vsel %vm506, %v443, 0
  %616 = vmatprep.subr.mxu0 0.0
  %617 = vmatpush1.msra.mxu0 %v68
  %618 = vmatprep.subr.mxu0 0.0
  %619 = vmatpush1.msra.mxu0 %v69
  %620 = vmatprep.subr.mxu0 0.0
  %621 = vmatpush1.msra.mxu0 %v70
  %622 = vmatprep.subr.mxu0 0.0
  %623 = vmatpush1.msra.mxu0 %v71
  %624 = vmatprep.subr.mxu0 0.0
  %625 = vmatpush1.msra.mxu0 %v72
  %626 = vmatprep.subr.mxu0 0.0
  %627 = vmatpush1.msra.mxu0 %v73
  %628 = vmatprep.subr.mxu0 0.0
  %629 = vmatpush1.msra.mxu0 %v74
  %630 = vmatprep.subr.mxu0 0.0
  %631 = vmatpush1.msra.mxu0 %v75
  %632 = vmatprep.subr.mxu0 0.0
  %633 = vmatpush1.msra.mxu0 0.0
  %634 = vmatprep.subr.mxu0 0.0
  %635 = vmatpush1.msra.mxu0 0.0
  %636 = vmatprep.subr.mxu0 0.0
  %637 = vmatpush1.msra.mxu0 0.0
  %638 = vmatprep.subr.mxu0 0.0
  %639 = vmatpush1.msra.mxu0 0.0
  %640 = vmatprep.subr.mxu0 0.0
  %641 = vmatpush1.msra.mxu0 0.0
  %642 = vmatprep.subr.mxu0 0.0
  %643 = vmatpush1.msra.mxu0 0.0
  %644 = vmatprep.subr.mxu0 0.0
  %645 = vmatpush1.msra.mxu0 0.0
  %646 = vmatprep.subr.mxu0 0.0
  %647 = vmatpush1.msra.mxu0 0.0
  %648 = vmatprep.subr.mxu0 0.0
  %649 = vmatpush1.msra.mxu0 0.0
  %650 = vmatprep.subr.mxu0 0.0
  %651 = vmatpush1.msra.mxu0 0.0
  %652 = vmatprep.subr.mxu0 0.0
  %653 = vmatpush1.msra.mxu0 0.0
  %654 = vmatprep.subr.mxu0 0.0
  %655 = vmatpush1.msra.mxu0 0.0
  %656 = vmatprep.subr.mxu0 0.0
  %657 = vmatpush1.msra.mxu0 0.0
  %658 = vmatprep.subr.mxu0 0.0
  %659 = vmatpush1.msra.mxu0 0.0
  %660 = vmatprep.subr.mxu0 0.0
  %661 = vmatpush1.msra.mxu0 0.0
  %662 = vmatprep.subr.mxu0 0.0
  %663 = vmatpush1.msra.mxu0 0.0
  %664 = vmatprep.subr.mxu0 0.0
  %665 = vmatpush1.msra.mxu0 0.0
  %666 = vmatprep.subr.mxu0 0.0
  %667 = vmatpush1.msra.mxu0 0.0
  %668 = vmatprep.subr.mxu0 0.0
  %669 = vmatpush1.msra.mxu0 0.0
  %670 = vmatprep.subr.mxu0 0.0
  %671 = vmatpush1.msra.mxu0 0.0
  %672 = vmatprep.subr.mxu0 0.0
  %673 = vmatpush1.msra.mxu0 0.0
  %674 = vmatprep.subr.mxu0 0.0
  %675 = vmatpush1.msra.mxu0 0.0
  %676 = vmatprep.subr.mxu0 0.0
  %677 = vmatpush1.msra.mxu0 0.0
  %678 = vmatprep.subr.mxu0 0.0
  %679 = vmatpush1.msra.mxu0 0.0
  %680 = vmatprep.mubr.f32.mxu0 0.0
  %681 = vmatmul.mubr.f32.gmra.mrb[0].mxu0 %v605
  %v682 = vpop.f32.mrb[0].mxu0
  %v683 = vadd.f32 %v586, %v682
  %v684 = vpop.f32.mrb[0].mxu0
  %685 = vmatprep.mubr.f32.mxu0 0.0
  %686 = vmatmul.mubr.f32.gmra.mrb[0].mxu0 %v608
  %v687 = vpop.f32.mrb[0].mxu0
  %v688 = vadd.f32 %v591, %v687
  %v689 = vpop.f32.mrb[0].mxu0
  %690 = vmatprep.mubr.f32.mxu0 0.0
  %691 = vmatmul.mubr.f32.gmra.mrb[0].mxu0 %v611
  %v692 = vpop.f32.mrb[0].mxu0
  %v693 = vadd.f32 %v596, %v692
  %v694 = vpop.f32.mrb[0].mxu0
  %695 = vmatprep.mubr.f32.mxu0 0.0
  %696 = vmatmul.mubr.f32.gmra.mrb[0].mxu0 %v614
  %v697 = vpop.f32.mrb[0].mxu0
  %v698 = vadd.f32 %v601, %v697
  %v699 = vpop.f32.mrb[0].mxu0
  %700 = vdwg.mxu0
  %v702 = vsel %vm506, %v488, 0
  %v705 = vsel %vm506, %v493, 0
  %v708 = vsel %vm506, %v498, 0
  %v711 = vsel %vm506, %v503, 0
  %713 = vmatprep.subr.mxu0 0.0
  %714 = vmatpush1.msra.mxu0 %v76
  %715 = vmatprep.subr.mxu0 0.0
  %716 = vmatpush1.msra.mxu0 %v77
  %717 = vmatprep.subr.mxu0 0.0
  %718 = vmatpush1.msra.mxu0 %v78
  %719 = vmatprep.subr.mxu0 0.0
  %720 = vmatpush1.msra.mxu0 %v79
  %721 = vmatprep.subr.mxu0 0.0
  %722 = vmatpush1.msra.mxu0 %v80
  %723 = vmatprep.subr.mxu0 0.0
  %724 = vmatpush1.msra.mxu0 %v81
  %725 = vmatprep.subr.mxu0 0.0
  %726 = vmatpush1.msra.mxu0 %v82
  %727 = vmatprep.subr.mxu0 0.0
  %728 = vmatpush1.msra.mxu0 %v83
  %729 = vmatprep.subr.mxu0 0.0
  %730 = vmatpush1.msra.mxu0 0.0
  %731 = vmatprep.subr.mxu0 0.0
  %732 = vmatpush1.msra.mxu0 0.0
  %733 = vmatprep.subr.mxu0 0.0
  %734 = vmatpush1.msra.mxu0 0.0
  %735 = vmatprep.subr.mxu0 0.0
  %736 = vmatpush1.msra.mxu0 0.0
  %737 = vmatprep.subr.mxu0 0.0
  %738 = vmatpush1.msra.mxu0 0.0
  %739 = vmatprep.subr.mxu0 0.0
  %740 = vmatpush1.msra.mxu0 0.0
  %741 = vmatprep.subr.mxu0 0.0
  %742 = vmatpush1.msra.mxu0 0.0
  %743 = vmatprep.subr.mxu0 0.0
  %744 = vmatpush1.msra.mxu0 0.0
  %745 = vmatprep.subr.mxu0 0.0
  %746 = vmatpush1.msra.mxu0 0.0
  %747 = vmatprep.subr.mxu0 0.0
  %748 = vmatpush1.msra.mxu0 0.0
  %749 = vmatprep.subr.mxu0 0.0
  %750 = vmatpush1.msra.mxu0 0.0
  %751 = vmatprep.subr.mxu0 0.0
  %752 = vmatpush1.msra.mxu0 0.0
  %753 = vmatprep.subr.mxu0 0.0
  %754 = vmatpush1.msra.mxu0 0.0
  %755 = vmatprep.subr.mxu0 0.0
  %756 = vmatpush1.msra.mxu0 0.0
  %757 = vmatprep.subr.mxu0 0.0
  %758 = vmatpush1.msra.mxu0 0.0
  %759 = vmatprep.subr.mxu0 0.0
  %760 = vmatpush1.msra.mxu0 0.0
  %761 = vmatprep.subr.mxu0 0.0
  %762 = vmatpush1.msra.mxu0 0.0
  %763 = vmatprep.subr.mxu0 0.0
  %764 = vmatpush1.msra.mxu0 0.0
  %765 = vmatprep.subr.mxu0 0.0
  %766 = vmatpush1.msra.mxu0 0.0
  %767 = vmatprep.subr.mxu0 0.0
  %768 = vmatpush1.msra.mxu0 0.0
  %769 = vmatprep.subr.mxu0 0.0
  %770 = vmatpush1.msra.mxu0 0.0
  %771 = vmatprep.subr.mxu0 0.0
  %772 = vmatpush1.msra.mxu0 0.0
  %773 = vmatprep.subr.mxu0 0.0
  %774 = vmatpush1.msra.mxu0 0.0
  %775 = vmatprep.subr.mxu0 0.0
  %776 = vmatpush1.msra.mxu0 0.0
  %777 = vmatprep.mubr.f32.mxu0 0.0
  %778 = vmatmul.mubr.f32.gmra.mrb[0].mxu0 %v702
  %v779 = vpop.f32.mrb[0].mxu0
  %v780 = vadd.f32 0.0, %v779
  %v781 = vpop.f32.mrb[0].mxu0
  %782 = vmatprep.mubr.f32.mxu0 0.0
  %783 = vmatmul.mubr.f32.gmra.mrb[0].mxu0 %v705
  %v784 = vpop.f32.mrb[0].mxu0
  %v785 = vadd.f32 0.0, %v784
  %v786 = vpop.f32.mrb[0].mxu0
  %787 = vmatprep.mubr.f32.mxu0 0.0
  %788 = vmatmul.mubr.f32.gmra.mrb[0].mxu0 %v708
  %v789 = vpop.f32.mrb[0].mxu0
  %v790 = vadd.f32 0.0, %v789
  %v791 = vpop.f32.mrb[0].mxu0
  %792 = vmatprep.mubr.f32.mxu0 0.0
  %793 = vmatmul.mubr.f32.gmra.mrb[0].mxu0 %v711
  %v794 = vpop.f32.mrb[0].mxu0
  %v795 = vadd.f32 0.0, %v794
  %v796 = vpop.f32.mrb[0].mxu0
  %797 = vdwg.mxu0
  %v799 = vsel %vm506, %v468, 0
  %v802 = vsel %vm506, %v473, 0
  %v805 = vsel %vm506, %v478, 0
  %v808 = vsel %vm506, %v483, 0
  %810 = vmatprep.subr.mxu0 0.0
  %811 = vmatpush1.msra.mxu0 %v68
  %812 = vmatprep.subr.mxu0 0.0
  %813 = vmatpush1.msra.mxu0 %v69
  %814 = vmatprep.subr.mxu0 0.0
  %815 = vmatpush1.msra.mxu0 %v70
  %816 = vmatprep.subr.mxu0 0.0
  %817 = vmatpush1.msra.mxu0 %v71
  %818 = vmatprep.subr.mxu0 0.0
  %819 = vmatpush1.msra.mxu0 %v72
  %820 = vmatprep.subr.mxu0 0.0
  %821 = vmatpush1.msra.mxu0 %v73
  %822 = vmatprep.subr.mxu0 0.0
  %823 = vmatpush1.msra.mxu0 %v74
  %824 = vmatprep.subr.mxu0 0.0
  %825 = vmatpush1.msra.mxu0 %v75
  %826 = vmatprep.subr.mxu0 0.0
  %827 = vmatpush1.msra.mxu0 0.0
  %828 = vmatprep.subr.mxu0 0.0
  %829 = vmatpush1.msra.mxu0 0.0
  %830 = vmatprep.subr.mxu0 0.0
  %831 = vmatpush1.msra.mxu0 0.0
  %832 = vmatprep.subr.mxu0 0.0
  %833 = vmatpush1.msra.mxu0 0.0
  %834 = vmatprep.subr.mxu0 0.0
  %835 = vmatpush1.msra.mxu0 0.0
  %836 = vmatprep.subr.mxu0 0.0
  %837 = vmatpush1.msra.mxu0 0.0
  %838 = vmatprep.subr.mxu0 0.0
  %839 = vmatpush1.msra.mxu0 0.0
  %840 = vmatprep.subr.mxu0 0.0
  %841 = vmatpush1.msra.mxu0 0.0
  %842 = vmatprep.subr.mxu0 0.0
  %843 = vmatpush1.msra.mxu0 0.0
  %844 = vmatprep.subr.mxu0 0.0
  %845 = vmatpush1.msra.mxu0 0.0
  %846 = vmatprep.subr.mxu0 0.0
  %847 = vmatpush1.msra.mxu0 0.0
  %848 = vmatprep.subr.mxu0 0.0
  %849 = vmatpush1.msra.mxu0 0.0
  %850 = vmatprep.subr.mxu0 0.0
  %851 = vmatpush1.msra.mxu0 0.0
  %852 = vmatprep.subr.mxu0 0.0
  %853 = vmatpush1.msra.mxu0 0.0
  %854 = vmatprep.subr.mxu0 0.0
  %855 = vmatpush1.msra.mxu0 0.0
  %856 = vmatprep.subr.mxu0 0.0
  %857 = vmatpush1.msra.mxu0 0.0
  %858 = vmatprep.subr.mxu0 0.0
  %859 = vmatpush1.msra.mxu0 0.0
  %860 = vmatprep.subr.mxu0 0.0
  %861 = vmatpush1.msra.mxu0 0.0
  %862 = vmatprep.subr.mxu0 0.0
  %863 = vmatpush1.msra.mxu0 0.0
  %864 = vmatprep.subr.mxu0 0.0
  %865 = vmatpush1.msra.mxu0 0.0
  %866 = vmatprep.subr.mxu0 0.0
  %867 = vmatpush1.msra.mxu0 0.0
  %868 = vmatprep.subr.mxu0 0.0
  %869 = vmatpush1.msra.mxu0 0.0
  %870 = vmatprep.subr.mxu0 0.0
  %871 = vmatpush1.msra.mxu0 0.0
  %872 = vmatprep.subr.mxu0 0.0
  %873 = vmatpush1.msra.mxu0 0.0
  %874 = vmatprep.mubr.f32.mxu0 0.0
  %875 = vmatmul.mubr.f32.gmra.mrb[0].mxu0 %v799
  %v876 = vpop.f32.mrb[0].mxu0
  %v877 = vadd.f32 %v780, %v876
  %v878 = vpop.f32.mrb[0].mxu0
  %879 = vmatprep.mubr.f32.mxu0 0.0
  %880 = vmatmul.mubr.f32.gmra.mrb[0].mxu0 %v802
  %v881 = vpop.f32.mrb[0].mxu0
  %v882 = vadd.f32 %v785, %v881
  %v883 = vpop.f32.mrb[0].mxu0
  %884 = vmatprep.mubr.f32.mxu0 0.0
  %885 = vmatmul.mubr.f32.gmra.mrb[0].mxu0 %v805
  %v886 = vpop.f32.mrb[0].mxu0
  %v887 = vadd.f32 %v790, %v886
  %v888 = vpop.f32.mrb[0].mxu0
  %889 = vmatprep.mubr.f32.mxu0 0.0
  %890 = vmatmul.mubr.f32.gmra.mrb[0].mxu0 %v808
  %v891 = vpop.f32.mrb[0].mxu0
  %v892 = vadd.f32 %v795, %v891
  %v893 = vpop.f32.mrb[0].mxu0
  %894 = vdwg.mxu0
  %v895 = vlaneseq
  %v896 = vshrl.u32 %v895, 7
  %v897 = vsub.s32 0, %v896
  %v898 = vrot.slane %v84, %v897
  %v899 = vadd.f32 %v683, %v898
  %v900 = vadd.f32 %v688, %v898
  %v901 = vadd.f32 %v693, %v898
  %v902 = vadd.f32 %v698, %v898
  %v903 = vmul.f32 %v899, %v29
  %v904 = vmul.f32 %v900, %v30
  %v905 = vmul.f32 %v901, %v31
  %v906 = vmul.f32 %v902, %v32
  %907 = vmatprep.subr.mxu0 0.0
  %908 = vmatpush1.msra.mxu0 %v903
  %909 = vmatprep.subr.mxu0 0.0
  %910 = vmatpush1.msra.mxu0 %v904
  %911 = vmatprep.subr.mxu0 0.0
  %912 = vmatpush1.msra.mxu0 %v905
  %913 = vmatprep.subr.mxu0 0.0
  %914 = vmatpush1.msra.mxu0 %v906
  %915 = vmatprep.subr.mxu0 0.0
  %916 = vmatpush1.msra.mxu0 0.0
  %917 = vmatprep.subr.mxu0 0.0
  %918 = vmatpush1.msra.mxu0 0.0
  %919 = vmatprep.subr.mxu0 0.0
  %920 = vmatpush1.msra.mxu0 0.0
  %921 = vmatprep.subr.mxu0 0.0
  %922 = vmatpush1.msra.mxu0 0.0
  %923 = vmatprep.subr.mxu0 0.0
  %924 = vmatpush1.msra.mxu0 0.0
  %925 = vmatprep.subr.mxu0 0.0
  %926 = vmatpush1.msra.mxu0 0.0
  %927 = vmatprep.subr.mxu0 0.0
  %928 = vmatpush1.msra.mxu0 0.0
  %929 = vmatprep.subr.mxu0 0.0
  %930 = vmatpush1.msra.mxu0 0.0
  %931 = vmatprep.subr.mxu0 0.0
  %932 = vmatpush1.msra.mxu0 0.0
  %933 = vmatprep.subr.mxu0 0.0
  %934 = vmatpush1.msra.mxu0 0.0
  %935 = vmatprep.subr.mxu0 0.0
  %936 = vmatpush1.msra.mxu0 0.0
  %937 = vmatprep.subr.mxu0 0.0
  %938 = vmatpush1.msra.mxu0 0.0
  %939 = vmatprep.subr.mxu0 0.0
  %940 = vmatpush1.msra.mxu0 0.0
  %941 = vmatprep.subr.mxu0 0.0
  %942 = vmatpush1.msra.mxu0 0.0
  %943 = vmatprep.subr.mxu0 0.0
  %944 = vmatpush1.msra.mxu0 0.0
  %945 = vmatprep.subr.mxu0 0.0
  %946 = vmatpush1.msra.mxu0 0.0
  %947 = vmatprep.subr.mxu0 0.0
  %948 = vmatpush1.msra.mxu0 0.0
  %949 = vmatprep.subr.mxu0 0.0
  %950 = vmatpush1.msra.mxu0 0.0
  %951 = vmatprep.subr.mxu0 0.0
  %952 = vmatpush1.msra.mxu0 0.0
  %953 = vmatprep.subr.mxu0 0.0
  %954 = vmatpush1.msra.mxu0 0.0
  %955 = vmatprep.subr.mxu0 0.0
  %956 = vmatpush1.msra.mxu0 0.0
  %957 = vmatprep.subr.mxu0 0.0
  %958 = vmatpush1.msra.mxu0 0.0
  %959 = vmatprep.subr.mxu0 0.0
  %960 = vmatpush1.msra.mxu0 0.0
  %961 = vmatprep.subr.mxu0 0.0
  %962 = vmatpush1.msra.mxu0 0.0
  %963 = vmatprep.subr.mxu0 0.0
  %964 = vmatpush1.msra.mxu0 0.0
  %965 = vmatprep.subr.mxu0 0.0
  %966 = vmatpush1.msra.mxu0 0.0
  %967 = vmatprep.subr.mxu0 0.0
  %968 = vmatpush1.msra.mxu0 0.0
  %969 = vmatprep.subr.mxu0 0.0
  %970 = vmatpush1.msra.mxu0 0.0
  %971 = vmatprep.mubr.f32.mxu0 0.0
  %972 = vmatmul.mubr.f32.gmra.mrb[0].mxu0 %v87
  %v973 = vpop.f32.mrb[0].mxu0
  %v974 = vadd.f32 0.0, %v973
  %v975 = vpop.f32.mrb[0].mxu0
  %976 = vmatprep.mubr.f32.mxu0 0.0
  %977 = vmatmul.mubr.f32.gmra.mrb[0].mxu0 %v90
  %v978 = vpop.f32.mrb[0].mxu0
  %v979 = vadd.f32 0.0, %v978
  %v980 = vpop.f32.mrb[0].mxu0
  %981 = vmatprep.mubr.f32.mxu0 0.0
  %982 = vmatmul.mubr.f32.gmra.mrb[0].mxu0 %v93
  %v983 = vpop.f32.mrb[0].mxu0
  %v984 = vadd.f32 0.0, %v983
  %v985 = vpop.f32.mrb[0].mxu0
  %986 = vmatprep.mubr.f32.mxu0 0.0
  %987 = vmatmul.mubr.f32.gmra.mrb[0].mxu0 %v96
  %v988 = vpop.f32.mrb[0].mxu0
  %v989 = vadd.f32 0.0, %v988
  %v990 = vpop.f32.mrb[0].mxu0
  %991 = vdwg.mxu0
  %v992 = vlaneseq
  %v993 = vshrl.u32 %v992, 7
  %v994 = vsub.s32 1, %v993
  %v995 = vrot.slane %v47, %v994
  %v997 = vsel %vm187, %v974, 0
  %v1000 = vsel %vm187, %v979, 0
  %v1003 = vsel %vm187, %v984, 0
  %v1006 = vsel %vm187, %v989, 0
  %v1009 = vsel %vm200, %v46, 0
  %1011 = vmatprep.subr.mxu0 0.0
  %1012 = vmatpush1.msra.mxu0 %v42
  %1013 = vmatprep.subr.mxu0 0.0
  %1014 = vmatpush1.msra.mxu0 %v43
  %1015 = vmatprep.subr.mxu0 0.0
  %1016 = vmatpush1.msra.mxu0 %v44
  %1017 = vmatprep.subr.mxu0 0.0
  %1018 = vmatpush1.msra.mxu0 %v45
  %1019 = vmatprep.subr.mxu0 0.0
  %1020 = vmatpush1.msra.mxu0 %v1009
  %1021 = vmatprep.subr.mxu0 0.0
  %1022 = vmatpush1.msra.mxu0 0.0
  %1023 = vmatprep.subr.mxu0 0.0
  %1024 = vmatpush1.msra.mxu0 0.0
  %1025 = vmatprep.subr.mxu0 0.0
  %1026 = vmatpush1.msra.mxu0 0.0
  %1027 = vmatprep.subr.mxu0 0.0
  %1028 = vmatpush1.msra.mxu0 0.0
  %1029 = vmatprep.subr.mxu0 0.0
  %1030 = vmatpush1.msra.mxu0 0.0
  %1031 = vmatprep.subr.mxu0 0.0
  %1032 = vmatpush1.msra.mxu0 0.0
  %1033 = vmatprep.subr.mxu0 0.0
  %1034 = vmatpush1.msra.mxu0 0.0
  %1035 = vmatprep.subr.mxu0 0.0
  %1036 = vmatpush1.msra.mxu0 0.0
  %1037 = vmatprep.subr.mxu0 0.0
  %1038 = vmatpush1.msra.mxu0 0.0
  %1039 = vmatprep.subr.mxu0 0.0
  %1040 = vmatpush1.msra.mxu0 0.0
  %1041 = vmatprep.subr.mxu0 0.0
  %1042 = vmatpush1.msra.mxu0 0.0
  %1043 = vmatprep.subr.mxu0 0.0
  %1044 = vmatpush1.msra.mxu0 0.0
  %1045 = vmatprep.subr.mxu0 0.0
  %1046 = vmatpush1.msra.mxu0 0.0
  %1047 = vmatprep.subr.mxu0 0.0
  %1048 = vmatpush1.msra.mxu0 0.0
  %1049 = vmatprep.subr.mxu0 0.0
  %1050 = vmatpush1.msra.mxu0 0.0
  %1051 = vmatprep.subr.mxu0 0.0
  %1052 = vmatpush1.msra.mxu0 0.0
  %1053 = vmatprep.subr.mxu0 0.0
  %1054 = vmatpush1.msra.mxu0 0.0
  %1055 = vmatprep.subr.mxu0 0.0
  %1056 = vmatpush1.msra.mxu0 0.0
  %1057 = vmatprep.subr.mxu0 0.0
  %1058 = vmatpush1.msra.mxu0 0.0
  %1059 = vmatprep.subr.mxu0 0.0
  %1060 = vmatpush1.msra.mxu0 0.0
  %1061 = vmatprep.subr.mxu0 0.0
  %1062 = vmatpush1.msra.mxu0 0.0
  %1063 = vmatprep.subr.mxu0 0.0
  %1064 = vmatpush1.msra.mxu0 0.0
  %1065 = vmatprep.subr.mxu0 0.0
  %1066 = vmatpush1.msra.mxu0 0.0
  %1067 = vmatprep.subr.mxu0 0.0
  %1068 = vmatpush1.msra.mxu0 0.0
  %1069 = vmatprep.subr.mxu0 0.0
  %1070 = vmatpush1.msra.mxu0 0.0
  %1071 = vmatprep.subr.mxu0 0.0
  %1072 = vmatpush1.msra.mxu0 0.0
  %1073 = vmatprep.subr.mxu0 0.0
  %1074 = vmatpush1.msra.mxu0 0.0
  %1075 = vmatprep.mubr.f32.mxu0 0.0
  %1076 = vmatmul.mubr.f32.gmra.mrb[0].mxu0 %v997
  %v1077 = vpop.f32.mrb[0].mxu0
  %v1078 = vadd.f32 %v995, %v1077
  %v1079 = vpop.f32.mrb[0].mxu0
  %1080 = vmatprep.mubr.f32.mxu0 0.0
  %1081 = vmatmul.mubr.f32.gmra.mrb[0].mxu0 %v1000
  %v1082 = vpop.f32.mrb[0].mxu0
  %v1083 = vadd.f32 %v995, %v1082
  %v1084 = vpop.f32.mrb[0].mxu0
  %1085 = vmatprep.mubr.f32.mxu0 0.0
  %1086 = vmatmul.mubr.f32.gmra.mrb[0].mxu0 %v1003
  %v1087 = vpop.f32.mrb[0].mxu0
  %v1088 = vadd.f32 %v995, %v1087
  %v1089 = vpop.f32.mrb[0].mxu0
  %1090 = vmatprep.mubr.f32.mxu0 0.0
  %1091 = vmatmul.mubr.f32.gmra.mrb[0].mxu0 %v1006
  %v1092 = vpop.f32.mrb[0].mxu0
  %v1093 = vadd.f32 %v995, %v1092
  %v1094 = vpop.f32.mrb[0].mxu0
  %1095 = vdwg.mxu0
  %v1096 = vtanh.pop %v1078
  %v1097 = vtanh.pop %v1083
  %v1098 = vtanh.pop %v1088
  %v1099 = vtanh.pop %v1093
  %v1100 = vmul.f32 %v877, %v29
  %v1101 = vmul.f32 %v882, %v30
  %v1102 = vmul.f32 %v887, %v31
  %v1103 = vmul.f32 %v892, %v32
  %v1104 = vsub.f32 1.0, %v877
  %v1105 = vsub.f32 1.0, %v882
  %v1106 = vsub.f32 1.0, %v887
  %v1107 = vsub.f32 1.0, %v892
  %v1108 = vmul.f32 %v1104, %v1096
  %v1109 = vmul.f32 %v1105, %v1097
  %v1110 = vmul.f32 %v1106, %v1098
  %v1111 = vmul.f32 %v1107, %v1099
  %v1112 = vadd.f32 %v1100, %v1108
  %v1113 = vadd.f32 %v1101, %v1109
  %v1114 = vadd.f32 %v1102, %v1110
  %v1115 = vadd.f32 %v1103, %v1111
  %v1117 = vsel %vm85, %v64, 0
  %1119 = vmatprep.subr.mxu0 0.0
  %1120 = vmatpush1.msra.mxu0 %v1112
  %1121 = vmatprep.subr.mxu0 0.0
  %1122 = vmatpush1.msra.mxu0 %v1113
  %1123 = vmatprep.subr.mxu0 0.0
  %1124 = vmatpush1.msra.mxu0 %v1114
  %1125 = vmatprep.subr.mxu0 0.0
  %1126 = vmatpush1.msra.mxu0 %v1115
  %1127 = vmatprep.subr.mxu0 0.0
  %1128 = vmatpush1.msra.mxu0 0.0
  %1129 = vmatprep.subr.mxu0 0.0
  %1130 = vmatpush1.msra.mxu0 0.0
  %1131 = vmatprep.subr.mxu0 0.0
  %1132 = vmatpush1.msra.mxu0 0.0
  %1133 = vmatprep.subr.mxu0 0.0
  %1134 = vmatpush1.msra.mxu0 0.0
  %1135 = vmatprep.subr.mxu0 0.0
  %1136 = vmatpush1.msra.mxu0 0.0
  %1137 = vmatprep.subr.mxu0 0.0
  %1138 = vmatpush1.msra.mxu0 0.0
  %1139 = vmatprep.subr.mxu0 0.0
  %1140 = vmatpush1.msra.mxu0 0.0
  %1141 = vmatprep.subr.mxu0 0.0
  %1142 = vmatpush1.msra.mxu0 0.0
  %1143 = vmatprep.subr.mxu0 0.0
  %1144 = vmatpush1.msra.mxu0 0.0
  %1145 = vmatprep.subr.mxu0 0.0
  %1146 = vmatpush1.msra.mxu0 0.0
  %1147 = vmatprep.subr.mxu0 0.0
  %1148 = vmatpush1.msra.mxu0 0.0
  %1149 = vmatprep.subr.mxu0 0.0
  %1150 = vmatpush1.msra.mxu0 0.0
  %1151 = vmatprep.subr.mxu0 0.0
  %1152 = vmatpush1.msra.mxu0 0.0
  %1153 = vmatprep.subr.mxu0 0.0
  %1154 = vmatpush1.msra.mxu0 0.0
  %1155 = vmatprep.subr.mxu0 0.0
  %1156 = vmatpush1.msra.mxu0 0.0
  %1157 = vmatprep.subr.mxu0 0.0
  %1158 = vmatpush1.msra.mxu0 0.0
  %1159 = vmatprep.subr.mxu0 0.0
  %1160 = vmatpush1.msra.mxu0 0.0
  %1161 = vmatprep.subr.mxu0 0.0
  %1162 = vmatpush1.msra.mxu0 0.0
  %1163 = vmatprep.subr.mxu0 0.0
  %1164 = vmatpush1.msra.mxu0 0.0
  %1165 = vmatprep.subr.mxu0 0.0
  %1166 = vmatpush1.msra.mxu0 0.0
  %1167 = vmatprep.subr.mxu0 0.0
  %1168 = vmatpush1.msra.mxu0 0.0
  %1169 = vmatprep.subr.mxu0 0.0
  %1170 = vmatpush1.msra.mxu0 0.0
  %1171 = vmatprep.subr.mxu0 0.0
  %1172 = vmatpush1.msra.mxu0 0.0
  %1173 = vmatprep.subr.mxu0 0.0
  %1174 = vmatpush1.msra.mxu0 0.0
  %1175 = vmatprep.subr.mxu0 0.0
  %1176 = vmatpush1.msra.mxu0 0.0
  %1177 = vmatprep.subr.mxu0 0.0
  %1178 = vmatpush1.msra.mxu0 0.0
  %1179 = vmatprep.subr.mxu0 0.0
  %1180 = vmatpush1.msra.mxu0 0.0
  %1181 = vmatprep.subr.mxu0 0.0
  %1182 = vmatpush1.msra.mxu0 0.0
  %1183 = vmatprep.mubr.f32.mxu0 0.0
  %1184 = vmatmul.mubr.f32.gmra.mrb[0].mxu0 %v1117
  %v1185 = vpop.f32.mrb[0].mxu0
  %v1186 = vadd.f32 0.0, %v1185
  %v1187 = vpop.f32.mrb[0].mxu0
  %1188 = vdwg.mxu0
  %v1189 = vld [vmem:[%s7] sm:$0xff]
  %v1190 = vld [vmem:[%s7 + $0x8] sm:$0xff]
  %v1191 = vld [vmem:[%s7 + $0x10] sm:$0xff]
  %v1192 = vld [vmem:[%s7 + $0x18] sm:$0xff]
  %v1194 = vsel %vm85, %v65, 0
  %1196 = vmatprep.subr.mxu0 0.0
  %1197 = vmatpush1.msra.mxu0 %v1112
  %1198 = vmatprep.subr.mxu0 0.0
  %1199 = vmatpush1.msra.mxu0 %v1113
  %1200 = vmatprep.subr.mxu0 0.0
  %1201 = vmatpush1.msra.mxu0 %v1114
  %1202 = vmatprep.subr.mxu0 0.0
  %1203 = vmatpush1.msra.mxu0 %v1115
  %1204 = vmatprep.subr.mxu0 0.0
  %1205 = vmatpush1.msra.mxu0 0.0
  %1206 = vmatprep.subr.mxu0 0.0
  %1207 = vmatpush1.msra.mxu0 0.0
  %1208 = vmatprep.subr.mxu0 0.0
  %1209 = vmatpush1.msra.mxu0 0.0
  %1210 = vmatprep.subr.mxu0 0.0
  %1211 = vmatpush1.msra.mxu0 0.0
  %1212 = vmatprep.subr.mxu0 0.0
  %1213 = vmatpush1.msra.mxu0 0.0
  %1214 = vmatprep.subr.mxu0 0.0
  %1215 = vmatpush1.msra.mxu0 0.0
  %1216 = vmatprep.subr.mxu0 0.0
  %1217 = vmatpush1.msra.mxu0 0.0
  %1218 = vmatprep.subr.mxu0 0.0
  %1219 = vmatpush1.msra.mxu0 0.0
  %1220 = vmatprep.subr.mxu0 0.0
  %1221 = vmatpush1.msra.mxu0 0.0
  %1222 = vmatprep.subr.mxu0 0.0
  %1223 = vmatpush1.msra.mxu0 0.0
  %1224 = vmatprep.subr.mxu0 0.0
  %1225 = vmatpush1.msra.mxu0 0.0
  %1226 = vmatprep.subr.mxu0 0.0
  %1227 = vmatpush1.msra.mxu0 0.0
  %1228 = vmatprep.subr.mxu0 0.0
  %1229 = vmatpush1.msra.mxu0 0.0
  %1230 = vmatprep.subr.mxu0 0.0
  %1231 = vmatpush1.msra.mxu0 0.0
  %1232 = vmatprep.subr.mxu0 0.0
  %1233 = vmatpush1.msra.mxu0 0.0
  %1234 = vmatprep.subr.mxu0 0.0
  %1235 = vmatpush1.msra.mxu0 0.0
  %1236 = vmatprep.subr.mxu0 0.0
  %1237 = vmatpush1.msra.mxu0 0.0
  %1238 = vmatprep.subr.mxu0 0.0
  %1239 = vmatpush1.msra.mxu0 0.0
  %1240 = vmatprep.subr.mxu0 0.0
  %1241 = vmatpush1.msra.mxu0 0.0
  %1242 = vmatprep.subr.mxu0 0.0
  %1243 = vmatpush1.msra.mxu0 0.0
  %1244 = vmatprep.subr.mxu0 0.0
  %1245 = vmatpush1.msra.mxu0 0.0
  %1246 = vmatprep.subr.mxu0 0.0
  %1247 = vmatpush1.msra.mxu0 0.0
  %1248 = vmatprep.subr.mxu0 0.0
  %1249 = vmatpush1.msra.mxu0 0.0
  %1250 = vmatprep.subr.mxu0 0.0
  %1251 = vmatpush1.msra.mxu0 0.0
  %1252 = vmatprep.subr.mxu0 0.0
  %1253 = vmatpush1.msra.mxu0 0.0
  %1254 = vmatprep.subr.mxu0 0.0
  %1255 = vmatpush1.msra.mxu0 0.0
  %1256 = vmatprep.subr.mxu0 0.0
  %1257 = vmatpush1.msra.mxu0 0.0
  %1258 = vmatprep.subr.mxu0 0.0
  %1259 = vmatpush1.msra.mxu0 0.0
  %1260 = vmatprep.mubr.f32.mxu0 0.0
  %1261 = vmatmul.mubr.f32.gmra.mrb[0].mxu0 %v1194
  %v1262 = vpop.f32.mrb[0].mxu0
  %v1263 = vadd.f32 0.0, %v1262
  %v1264 = vpop.f32.mrb[0].mxu0
  %1265 = vdwg.mxu0
  %v1266 = vld [vmem:[%s7 + $0x20] sm:$0xff]
  %v1267 = vld [vmem:[%s7 + $0x28] sm:$0xff]
  %v1268 = vld [vmem:[%s7 + $0x30] sm:$0xff]
  %v1269 = vld [vmem:[%s7 + $0x38] sm:$0xff]
  %v1271 = vsel %vm85, %v1263, 0
  %1273 = vmatprep.subr.mxu0 0.0
  %1274 = vmatpush1.msra.mxu0 %v1266
  %1275 = vmatprep.subr.mxu0 0.0
  %1276 = vmatpush1.msra.mxu0 %v1267
  %1277 = vmatprep.subr.mxu0 0.0
  %1278 = vmatpush1.msra.mxu0 %v1268
  %1279 = vmatprep.subr.mxu0 0.0
  %1280 = vmatpush1.msra.mxu0 %v1269
  %1281 = vmatprep.subr.mxu0 0.0
  %1282 = vmatpush1.msra.mxu0 0.0
  %1283 = vmatprep.subr.mxu0 0.0
  %1284 = vmatpush1.msra.mxu0 0.0
  %1285 = vmatprep.subr.mxu0 0.0
  %1286 = vmatpush1.msra.mxu0 0.0
  %1287 = vmatprep.subr.mxu0 0.0
  %1288 = vmatpush1.msra.mxu0 0.0
  %1289 = vmatprep.subr.mxu0 0.0
  %1290 = vmatpush1.msra.mxu0 0.0
  %1291 = vmatprep.subr.mxu0 0.0
  %1292 = vmatpush1.msra.mxu0 0.0
  %1293 = vmatprep.subr.mxu0 0.0
  %1294 = vmatpush1.msra.mxu0 0.0
  %1295 = vmatprep.subr.mxu0 0.0
  %1296 = vmatpush1.msra.mxu0 0.0
  %1297 = vmatprep.subr.mxu0 0.0
  %1298 = vmatpush1.msra.mxu0 0.0
  %1299 = vmatprep.subr.mxu0 0.0
  %1300 = vmatpush1.msra.mxu0 0.0
  %1301 = vmatprep.subr.mxu0 0.0
  %1302 = vmatpush1.msra.mxu0 0.0
  %1303 = vmatprep.subr.mxu0 0.0
  %1304 = vmatpush1.msra.mxu0 0.0
  %1305 = vmatprep.subr.mxu0 0.0
  %1306 = vmatpush1.msra.mxu0 0.0
  %1307 = vmatprep.subr.mxu0 0.0
  %1308 = vmatpush1.msra.mxu0 0.0
  %1309 = vmatprep.subr.mxu0 0.0
  %1310 = vmatpush1.msra.mxu0 0.0
  %1311 = vmatprep.subr.mxu0 0.0
  %1312 = vmatpush1.msra.mxu0 0.0
  %1313 = vmatprep.subr.mxu0 0.0
  %1314 = vmatpush1.msra.mxu0 0.0
  %1315 = vmatprep.subr.mxu0 0.0
  %1316 = vmatpush1.msra.mxu0 0.0
  %1317 = vmatprep.subr.mxu0 0.0
  %1318 = vmatpush1.msra.mxu0 0.0
  %1319 = vmatprep.subr.mxu0 0.0
  %1320 = vmatpush1.msra.mxu0 0.0
  %1321 = vmatprep.subr.mxu0 0.0
  %1322 = vmatpush1.msra.mxu0 0.0
  %1323 = vmatprep.subr.mxu0 0.0
  %1324 = vmatpush1.msra.mxu0 0.0
  %1325 = vmatprep.subr.mxu0 0.0
  %1326 = vmatpush1.msra.mxu0 0.0
  %1327 = vmatprep.subr.mxu0 0.0
  %1328 = vmatpush1.msra.mxu0 0.0
  %1329 = vmatprep.subr.mxu0 0.0
  %1330 = vmatpush1.msra.mxu0 0.0
  %1331 = vmatprep.subr.mxu0 0.0
  %1332 = vmatpush1.msra.mxu0 0.0
  %1333 = vmatprep.subr.mxu0 0.0
  %1334 = vmatpush1.msra.mxu0 0.0
  %1335 = vmatprep.subr.mxu0 0.0
  %1336 = vmatpush1.msra.mxu0 0.0
  %1337 = vmatprep.mubr.f32.mxu0 0.0
  %1338 = vmatmul.mubr.f32.gmra.mrb[0].mxu0 %v1271
  %v1339 = vpop.f32.mrb[0].mxu0
  %v1340 = vadd.f32 0.0, %v1339
  %v1341 = vpop.f32.mrb[0].mxu0
  %1342 = vdwg.mxu0
  %v1344 = vsel %vm85, %v1186, 0
  %1346 = vmatprep.subr.mxu0 0.0
  %1347 = vmatpush1.msra.mxu0 %v1189
  %1348 = vmatprep.subr.mxu0 0.0
  %1349 = vmatpush1.msra.mxu0 %v1190
  %1350 = vmatprep.subr.mxu0 0.0
  %1351 = vmatpush1.msra.mxu0 %v1191
  %1352 = vmatprep.subr.mxu0 0.0
  %1353 = vmatpush1.msra.mxu0 %v1192
  %1354 = vmatprep.subr.mxu0 0.0
  %1355 = vmatpush1.msra.mxu0 0.0
  %1356 = vmatprep.subr.mxu0 0.0
  %1357 = vmatpush1.msra.mxu0 0.0
  %1358 = vmatprep.subr.mxu0 0.0
  %1359 = vmatpush1.msra.mxu0 0.0
  %1360 = vmatprep.subr.mxu0 0.0
  %1361 = vmatpush1.msra.mxu0 0.0
  %1362 = vmatprep.subr.mxu0 0.0
  %1363 = vmatpush1.msra.mxu0 0.0
  %1364 = vmatprep.subr.mxu0 0.0
  %1365 = vmatpush1.msra.mxu0 0.0
  %1366 = vmatprep.subr.mxu0 0.0
  %1367 = vmatpush1.msra.mxu0 0.0
  %1368 = vmatprep.subr.mxu0 0.0
  %1369 = vmatpush1.msra.mxu0 0.0
  %1370 = vmatprep.subr.mxu0 0.0
  %1371 = vmatpush1.msra.mxu0 0.0
  %1372 = vmatprep.subr.mxu0 0.0
  %1373 = vmatpush1.msra.mxu0 0.0
  %1374 = vmatprep.subr.mxu0 0.0
  %1375 = vmatpush1.msra.mxu0 0.0
  %1376 = vmatprep.subr.mxu0 0.0
  %1377 = vmatpush1.msra.mxu0 0.0
  %1378 = vmatprep.subr.mxu0 0.0
  %1379 = vmatpush1.msra.mxu0 0.0
  %1380 = vmatprep.subr.mxu0 0.0
  %1381 = vmatpush1.msra.mxu0 0.0
  %1382 = vmatprep.subr.mxu0 0.0
  %1383 = vmatpush1.msra.mxu0 0.0
  %1384 = vmatprep.subr.mxu0 0.0
  %1385 = vmatpush1.msra.mxu0 0.0
  %1386 = vmatprep.subr.mxu0 0.0
  %1387 = vmatpush1.msra.mxu0 0.0
  %1388 = vmatprep.subr.mxu0 0.0
  %1389 = vmatpush1.msra.mxu0 0.0
  %1390 = vmatprep.subr.mxu0 0.0
  %1391 = vmatpush1.msra.mxu0 0.0
  %1392 = vmatprep.subr.mxu0 0.0
  %1393 = vmatpush1.msra.mxu0 0.0
  %1394 = vmatprep.subr.mxu0 0.0
  %1395 = vmatpush1.msra.mxu0 0.0
  %1396 = vmatprep.subr.mxu0 0.0
  %1397 = vmatpush1.msra.mxu0 0.0
  %1398 = vmatprep.subr.mxu0 0.0
  %1399 = vmatpush1.msra.mxu0 0.0
  %1400 = vmatprep.subr.mxu0 0.0
  %1401 = vmatpush1.msra.mxu0 0.0
  %1402 = vmatprep.subr.mxu0 0.0
  %1403 = vmatpush1.msra.mxu0 0.0
  %1404 = vmatprep.subr.mxu0 0.0
  %1405 = vmatpush1.msra.mxu0 0.0
  %1406 = vmatprep.subr.mxu0 0.0
  %1407 = vmatpush1.msra.mxu0 0.0
  %1408 = vmatprep.subr.mxu0 0.0
  %1409 = vmatpush1.msra.mxu0 0.0
  %1410 = vmatprep.mubr.f32.mxu0 0.0
  %1411 = vmatmul.mubr.f32.gmra.mrb[0].mxu0 %v1344
  %v1412 = vpop.f32.mrb[0].mxu0
  %v1413 = vadd.f32 %v1340, %v1412
  %v1414 = vpop.f32.mrb[0].mxu0
  %1415 = vdwg.mxu0
  %v1417 = vsel %vm85, %v66, 0
  %1419 = vmatprep.subr.mxu0 0.0
  %1420 = vmatpush1.msra.mxu0 %v1112
  %1421 = vmatprep.subr.mxu0 0.0
  %1422 = vmatpush1.msra.mxu0 %v1113
  %1423 = vmatprep.subr.mxu0 0.0
  %1424 = vmatpush1.msra.mxu0 %v1114
  %1425 = vmatprep.subr.mxu0 0.0
  %1426 = vmatpush1.msra.mxu0 %v1115
  %1427 = vmatprep.subr.mxu0 0.0
  %1428 = vmatpush1.msra.mxu0 0.0
  %1429 = vmatprep.subr.mxu0 0.0
  %1430 = vmatpush1.msra.mxu0 0.0
  %1431 = vmatprep.subr.mxu0 0.0
  %1432 = vmatpush1.msra.mxu0 0.0
  %1433 = vmatprep.subr.mxu0 0.0
  %1434 = vmatpush1.msra.mxu0 0.0
  %1435 = vmatprep.subr.mxu0 0.0
  %1436 = vmatpush1.msra.mxu0 0.0
  %1437 = vmatprep.subr.mxu0 0.0
  %1438 = vmatpush1.msra.mxu0 0.0
  %1439 = vmatprep.subr.mxu0 0.0
  %1440 = vmatpush1.msra.mxu0 0.0
  %1441 = vmatprep.subr.mxu0 0.0
  %1442 = vmatpush1.msra.mxu0 0.0
  %1443 = vmatprep.subr.mxu0 0.0
  %1444 = vmatpush1.msra.mxu0 0.0
  %1445 = vmatprep.subr.mxu0 0.0
  %1446 = vmatpush1.msra.mxu0 0.0
  %1447 = vmatprep.subr.mxu0 0.0
  %1448 = vmatpush1.msra.mxu0 0.0
  %1449 = vmatprep.subr.mxu0 0.0
  %1450 = vmatpush1.msra.mxu0 0.0
  %1451 = vmatprep.subr.mxu0 0.0
  %1452 = vmatpush1.msra.mxu0 0.0
  %1453 = vmatprep.subr.mxu0 0.0
  %1454 = vmatpush1.msra.mxu0 0.0
  %1455 = vmatprep.subr.mxu0 0.0
  %1456 = vmatpush1.msra.mxu0 0.0
  %1457 = vmatprep.subr.mxu0 0.0
  %1458 = vmatpush1.msra.mxu0 0.0
  %1459 = vmatprep.subr.mxu0 0.0
  %1460 = vmatpush1.msra.mxu0 0.0
  %1461 = vmatprep.subr.mxu0 0.0
  %1462 = vmatpush1.msra.mxu0 0.0
  %1463 = vmatprep.subr.mxu0 0.0
  %1464 = vmatpush1.msra.mxu0 0.0
  %1465 = vmatprep.subr.mxu0 0.0
  %1466 = vmatpush1.msra.mxu0 0.0
  %1467 = vmatprep.subr.mxu0 0.0
  %1468 = vmatpush1.msra.mxu0 0.0
  %1469 = vmatprep.subr.mxu0 0.0
  %1470 = vmatpush1.msra.mxu0 0.0
  %1471 = vmatprep.subr.mxu0 0.0
  %1472 = vmatpush1.msra.mxu0 0.0
  %1473 = vmatprep.subr.mxu0 0.0
  %1474 = vmatpush1.msra.mxu0 0.0
  %1475 = vmatprep.subr.mxu0 0.0
  %1476 = vmatpush1.msra.mxu0 0.0
  %1477 = vmatprep.subr.mxu0 0.0
  %1478 = vmatpush1.msra.mxu0 0.0
  %1479 = vmatprep.subr.mxu0 0.0
  %1480 = vmatpush1.msra.mxu0 0.0
  %1481 = vmatprep.subr.mxu0 0.0
  %1482 = vmatpush1.msra.mxu0 0.0
  %1483 = vmatprep.mubr.f32.mxu0 0.0
  %1484 = vmatmul.mubr.f32.gmra.mrb[0].mxu0 %v1417
  %v1485 = vpop.f32.mrb[0].mxu0
  %v1486 = vadd.f32 0.0, %v1485
  %v1487 = vpop.f32.mrb[0].mxu0
  %1488 = vdwg.mxu0
  %v1489 = vld [vmem:[%s7 + $0x40] sm:$0xff]
  %v1490 = vld [vmem:[%s7 + $0x48] sm:$0xff]
  %v1491 = vld [vmem:[%s7 + $0x50] sm:$0xff]
  %v1492 = vld [vmem:[%s7 + $0x58] sm:$0xff]
  %v1494 = vsel %vm85, %v1486, 0
  %1496 = vmatprep.subr.mxu0 0.0
  %1497 = vmatpush1.msra.mxu0 %v1489
  %1498 = vmatprep.subr.mxu0 0.0
  %1499 = vmatpush1.msra.mxu0 %v1490
  %1500 = vmatprep.subr.mxu0 0.0
  %1501 = vmatpush1.msra.mxu0 %v1491
  %1502 = vmatprep.subr.mxu0 0.0
  %1503 = vmatpush1.msra.mxu0 %v1492
  %1504 = vmatprep.subr.mxu0 0.0
  %1505 = vmatpush1.msra.mxu0 0.0
  %1506 = vmatprep.subr.mxu0 0.0
  %1507 = vmatpush1.msra.mxu0 0.0
  %1508 = vmatprep.subr.mxu0 0.0
  %1509 = vmatpush1.msra.mxu0 0.0
  %1510 = vmatprep.subr.mxu0 0.0
  %1511 = vmatpush1.msra.mxu0 0.0
  %1512 = vmatprep.subr.mxu0 0.0
  %1513 = vmatpush1.msra.mxu0 0.0
  %1514 = vmatprep.subr.mxu0 0.0
  %1515 = vmatpush1.msra.mxu0 0.0
  %1516 = vmatprep.subr.mxu0 0.0
  %1517 = vmatpush1.msra.mxu0 0.0
  %1518 = vmatprep.subr.mxu0 0.0
  %1519 = vmatpush1.msra.mxu0 0.0
  %1520 = vmatprep.subr.mxu0 0.0
  %1521 = vmatpush1.msra.mxu0 0.0
  %1522 = vmatprep.subr.mxu0 0.0
  %1523 = vmatpush1.msra.mxu0 0.0
  %1524 = vmatprep.subr.mxu0 0.0
  %1525 = vmatpush1.msra.mxu0 0.0
  %1526 = vmatprep.subr.mxu0 0.0
  %1527 = vmatpush1.msra.mxu0 0.0
  %1528 = vmatprep.subr.mxu0 0.0
  %1529 = vmatpush1.msra.mxu0 0.0
  %1530 = vmatprep.subr.mxu0 0.0
  %1531 = vmatpush1.msra.mxu0 0.0
  %1532 = vmatprep.subr.mxu0 0.0
  %1533 = vmatpush1.msra.mxu0 0.0
  %1534 = vmatprep.subr.mxu0 0.0
  %1535 = vmatpush1.msra.mxu0 0.0
  %1536 = vmatprep.subr.mxu0 0.0
  %1537 = vmatpush1.msra.mxu0 0.0
  %1538 = vmatprep.subr.mxu0 0.0
  %1539 = vmatpush1.msra.mxu0 0.0
  %1540 = vmatprep.subr.mxu0 0.0
  %1541 = vmatpush1.msra.mxu0 0.0
  %1542 = vmatprep.subr.mxu0 0.0
  %1543 = vmatpush1.msra.mxu0 0.0
  %1544 = vmatprep.subr.mxu0 0.0
  %1545 = vmatpush1.msra.mxu0 0.0
  %1546 = vmatprep.subr.mxu0 0.0
  %1547 = vmatpush1.msra.mxu0 0.0
  %1548 = vmatprep.subr.mxu0 0.0
  %1549 = vmatpush1.msra.mxu0 0.0
  %1550 = vmatprep.subr.mxu0 0.0
  %1551 = vmatpush1.msra.mxu0 0.0
  %1552 = vmatprep.subr.mxu0 0.0
  %1553 = vmatpush1.msra.mxu0 0.0
  %1554 = vmatprep.subr.mxu0 0.0
  %1555 = vmatpush1.msra.mxu0 0.0
  %1556 = vmatprep.subr.mxu0 0.0
  %1557 = vmatpush1.msra.mxu0 0.0
  %1558 = vmatprep.subr.mxu0 0.0
  %1559 = vmatpush1.msra.mxu0 0.0
  %1560 = vmatprep.mubr.f32.mxu0 0.0
  %1561 = vmatmul.mubr.f32.gmra.mrb[0].mxu0 %v1494
  %v1562 = vpop.f32.mrb[0].mxu0
  %v1563 = vadd.f32 0.0, %v1562
  %v1564 = vpop.f32.mrb[0].mxu0
  %1565 = vdwg.mxu0
  %v1566 = vadd.f32 %v1413, %v1563
  %v1568 = vsel %vm85, %v67, 0
  %1570 = vmatprep.subr.mxu0 0.0
  %1571 = vmatpush1.msra.mxu0 %v1112
  %1572 = vmatprep.subr.mxu0 0.0
  %1573 = vmatpush1.msra.mxu0 %v1113
  %1574 = vmatprep.subr.mxu0 0.0
  %1575 = vmatpush1.msra.mxu0 %v1114
  %1576 = vmatprep.subr.mxu0 0.0
  %1577 = vmatpush1.msra.mxu0 %v1115
  %1578 = vmatprep.subr.mxu0 0.0
  %1579 = vmatpush1.msra.mxu0 0.0
  %1580 = vmatprep.subr.mxu0 0.0
  %1581 = vmatpush1.msra.mxu0 0.0
  %1582 = vmatprep.subr.mxu0 0.0
  %1583 = vmatpush1.msra.mxu0 0.0
  %1584 = vmatprep.subr.mxu0 0.0
  %1585 = vmatpush1.msra.mxu0 0.0
  %1586 = vmatprep.subr.mxu0 0.0
  %1587 = vmatpush1.msra.mxu0 0.0
  %1588 = vmatprep.subr.mxu0 0.0
  %1589 = vmatpush1.msra.mxu0 0.0
  %1590 = vmatprep.subr.mxu0 0.0
  %1591 = vmatpush1.msra.mxu0 0.0
  %1592 = vmatprep.subr.mxu0 0.0
  %1593 = vmatpush1.msra.mxu0 0.0
  %1594 = vmatprep.subr.mxu0 0.0
  %1595 = vmatpush1.msra.mxu0 0.0
  %1596 = vmatprep.subr.mxu0 0.0
  %1597 = vmatpush1.msra.mxu0 0.0
  %1598 = vmatprep.subr.mxu0 0.0
  %1599 = vmatpush1.msra.mxu0 0.0
  %1600 = vmatprep.subr.mxu0 0.0
  %1601 = vmatpush1.msra.mxu0 0.0
  %1602 = vmatprep.subr.mxu0 0.0
  %1603 = vmatpush1.msra.mxu0 0.0
  %1604 = vmatprep.subr.mxu0 0.0
  %1605 = vmatpush1.msra.mxu0 0.0
  %1606 = vmatprep.subr.mxu0 0.0
  %1607 = vmatpush1.msra.mxu0 0.0
  %1608 = vmatprep.subr.mxu0 0.0
  %1609 = vmatpush1.msra.mxu0 0.0
  %1610 = vmatprep.subr.mxu0 0.0
  %1611 = vmatpush1.msra.mxu0 0.0
  %1612 = vmatprep.subr.mxu0 0.0
  %1613 = vmatpush1.msra.mxu0 0.0
  %1614 = vmatprep.subr.mxu0 0.0
  %1615 = vmatpush1.msra.mxu0 0.0
  %1616 = vmatprep.subr.mxu0 0.0
  %1617 = vmatpush1.msra.mxu0 0.0
  %1618 = vmatprep.subr.mxu0 0.0
  %1619 = vmatpush1.msra.mxu0 0.0
  %1620 = vmatprep.subr.mxu0 0.0
  %1621 = vmatpush1.msra.mxu0 0.0
  %1622 = vmatprep.subr.mxu0 0.0
  %1623 = vmatpush1.msra.mxu0 0.0
  %1624 = vmatprep.subr.mxu0 0.0
  %1625 = vmatpush1.msra.mxu0 0.0
  %1626 = vmatprep.subr.mxu0 0.0
  %1627 = vmatpush1.msra.mxu0 0.0
  %1628 = vmatprep.subr.mxu0 0.0
  %1629 = vmatpush1.msra.mxu0 0.0
  %1630 = vmatprep.subr.mxu0 0.0
  %1631 = vmatpush1.msra.mxu0 0.0
  %1632 = vmatprep.subr.mxu0 0.0
  %1633 = vmatpush1.msra.mxu0 0.0
  %1634 = vmatprep.mubr.f32.mxu0 0.0
  %1635 = vmatmul.mubr.f32.gmra.mrb[0].mxu0 %v1568
  %v1636 = vpop.f32.mrb[0].mxu0
  %v1637 = vadd.f32 0.0, %v1636
  %v1638 = vpop.f32.mrb[0].mxu0
  %1639 = vdwg.mxu0
  %v1640 = vld [vmem:[%s7 + $0x60] sm:$0xff]
  %v1641 = vld [vmem:[%s7 + $0x68] sm:$0xff]
  %v1642 = vld [vmem:[%s7 + $0x70] sm:$0xff]
  %v1643 = vld [vmem:[%s7 + $0x78] sm:$0xff]
  %v1645 = vsel %vm85, %v1637, 0
  %1647 = vmatprep.subr.mxu0 0.0
  %1648 = vmatpush1.msra.mxu0 %v1640
  %1649 = vmatprep.subr.mxu0 0.0
  %1650 = vmatpush1.msra.mxu0 %v1641
  %1651 = vmatprep.subr.mxu0 0.0
  %1652 = vmatpush1.msra.mxu0 %v1642
  %1653 = vmatprep.subr.mxu0 0.0
  %1654 = vmatpush1.msra.mxu0 %v1643
  %1655 = vmatprep.subr.mxu0 0.0
  %1656 = vmatpush1.msra.mxu0 0.0
  %1657 = vmatprep.subr.mxu0 0.0
  %1658 = vmatpush1.msra.mxu0 0.0
  %1659 = vmatprep.subr.mxu0 0.0
  %1660 = vmatpush1.msra.mxu0 0.0
  %1661 = vmatprep.subr.mxu0 0.0
  %1662 = vmatpush1.msra.mxu0 0.0
  %1663 = vmatprep.subr.mxu0 0.0
  %1664 = vmatpush1.msra.mxu0 0.0
  %1665 = vmatprep.subr.mxu0 0.0
  %1666 = vmatpush1.msra.mxu0 0.0
  %1667 = vmatprep.subr.mxu0 0.0
  %1668 = vmatpush1.msra.mxu0 0.0
  %1669 = vmatprep.subr.mxu0 0.0
  %1670 = vmatpush1.msra.mxu0 0.0
  %1671 = vmatprep.subr.mxu0 0.0
  %1672 = vmatpush1.msra.mxu0 0.0
  %1673 = vmatprep.subr.mxu0 0.0
  %1674 = vmatpush1.msra.mxu0 0.0
  %1675 = vmatprep.subr.mxu0 0.0
  %1676 = vmatpush1.msra.mxu0 0.0
  %1677 = vmatprep.subr.mxu0 0.0
  %1678 = vmatpush1.msra.mxu0 0.0
  %1679 = vmatprep.subr.mxu0 0.0
  %1680 = vmatpush1.msra.mxu0 0.0
  %1681 = vmatprep.subr.mxu0 0.0
  %1682 = vmatpush1.msra.mxu0 0.0
  %1683 = vmatprep.subr.mxu0 0.0
  %1684 = vmatpush1.msra.mxu0 0.0
  %1685 = vmatprep.subr.mxu0 0.0
  %1686 = vmatpush1.msra.mxu0 0.0
  %1687 = vmatprep.subr.mxu0 0.0
  %1688 = vmatpush1.msra.mxu0 0.0
  %1689 = vmatprep.subr.mxu0 0.0
  %1690 = vmatpush1.msra.mxu0 0.0
  %1691 = vmatprep.subr.mxu0 0.0
  %1692 = vmatpush1.msra.mxu0 0.0
  %1693 = vmatprep.subr.mxu0 0.0
  %1694 = vmatpush1.msra.mxu0 0.0
  %1695 = vmatprep.subr.mxu0 0.0
  %1696 = vmatpush1.msra.mxu0 0.0
  %1697 = vmatprep.subr.mxu0 0.0
  %1698 = vmatpush1.msra.mxu0 0.0
  %1699 = vmatprep.subr.mxu0 0.0
  %1700 = vmatpush1.msra.mxu0 0.0
  %1701 = vmatprep.subr.mxu0 0.0
  %1702 = vmatpush1.msra.mxu0 0.0
  %1703 = vmatprep.subr.mxu0 0.0
  %1704 = vmatpush1.msra.mxu0 0.0
  %1705 = vmatprep.subr.mxu0 0.0
  %1706 = vmatpush1.msra.mxu0 0.0
  %1707 = vmatprep.subr.mxu0 0.0
  %1708 = vmatpush1.msra.mxu0 0.0
  %1709 = vmatprep.subr.mxu0 0.0
  %1710 = vmatpush1.msra.mxu0 0.0
  %1711 = vmatprep.mubr.f32.mxu0 0.0
  %1712 = vmatmul.mubr.f32.gmra.mrb[0].mxu0 %v1645
  %v1713 = vpop.f32.mrb[0].mxu0
  %v1714 = vadd.f32 0.0, %v1713
  %v1715 = vpop.f32.mrb[0].mxu0
  %1716 = vdwg.mxu0
  %v1717 = vadd.f32 %v1566, %v1714
  %1718 = vst [vmem:[%s8] sm:$0xff] %v1717
  // Predicated region
  $region34: #{tgcn_cell.1} parent=0 // pred_check
    _
  $region35: #{tgcn_cell.1} parent=0 // pred_check_branch
    %1720 = sbr.rel (0) target = $region37
  $region36: #{tgcn_cell.1} parent=0 // pred_region
    _
  $region37: #{tgcn_cell.1} parent=0 // pred_fallthru
    _
  // Predicated region
  $region38: #{tgcn_cell.1} parent=0 // pred_check
    _
  $region39: #{tgcn_cell.1} parent=0 // pred_check_branch
    %1722 = sbr.rel (0) target = $region41
  $region40: #{tgcn_cell.1} parent=0 // pred_region
    _
  $region41: #{tgcn_cell.1} parent=0 // pred_fallthru
    _

</llo_original>
